<compile_context>
chip_gen: v5e
topology: v5e:2x2
jax: 0.10.0
libtpu: 0.0.40
codegen_flags: <defaults>
</compile_context>

<pallas_src>
import numpy as np

import jax
import jax.numpy as jnp
from jax import lax
from jax.experimental import pallas as pl
from jax.experimental.pallas import tpu as pltpu

_BN_EPS = 1e-5


def _bn_fold(gamma, beta, mean, var):
    """Inference-mode BN as y = x*scale + bias (per output channel)."""
    scale = gamma / jnp.sqrt(var + _BN_EPS)
    return scale, beta - mean * scale


def _im2col_3x3(xp, stride, h_out, w_out):
    """xp: (B, H+2, W+2, C) zero-padded NHWC -> (B, H_out*W_out, 9*C)."""
    b = xp.shape[0]
    taps = []
    for kh in range(3):
        for kw in range(3):
            t = xp[:, kh:kh + stride * (h_out - 1) + 1:stride,
                      kw:kw + stride * (w_out - 1) + 1:stride, :]
            taps.append(t.reshape(b, h_out * w_out, -1))
    return jnp.concatenate(taps, axis=-1)


def _tap_masks(h_out, w_out):
    """(9, H_out*W_out, 1) f32: 1 where the 3x3 tap stays inside the image."""
    ho = np.arange(h_out)[:, None]
    wo = np.arange(w_out)[None, :]
    masks = np.zeros((9, h_out * w_out, 1), np.float32)
    for k in range(9):
        oh, ow = k // 3 - 1, k % 3 - 1
        ok = ((ho + oh >= 0) & (ho + oh < h_out) &
              (wo + ow >= 0) & (wo + ow < w_out))
        masks[k, :, 0] = ok.astype(np.float32).reshape(-1)
    return masks


def _make_block_kernel(hw_out, w_out, c_out):
    pad_rows = w_out + 1  # enough zero rows to absorb any 3x3 tap overflow

    def kernel(xcol_ref, xscol_ref, w1_ref, b1_ref, w2_ref, ws_ref, bout_ref,
               mask_ref, o_ref, y1ext_ref):
        # conv1 (im2col'd in the wrapper) + folded BN1 + ReLU, f32 accumulation.
        y1 = jnp.dot(xcol_ref[0], w1_ref[...],
                     preferred_element_type=jnp.float32)           # (HWo, Cout)
        y1 = jnp.maximum(y1 + b1_ref[...], 0.0)

        # Stage y1 into a row-padded VMEM scratch: conv2 taps are static slices.
        y1ext_ref[...] = jnp.zeros_like(y1ext_ref)
        y1ext_ref[pl.ds(pad_rows, hw_out), :] = y1

        # Shortcut (1x1 conv, folded BN) + combined output bias (BN2 + BN_s).
        acc = jnp.dot(xscol_ref[0], ws_ref[...],
                      preferred_element_type=jnp.float32) + bout_ref[...]

        # conv2 (3x3, stride 1) + folded BN2, accumulated tap by tap on the MXU.
        for k in range(9):
            d = (k // 3 - 1) * w_out + (k % 3 - 1)
            shifted = y1ext_ref[pl.ds(pad_rows + d, hw_out), :]    # (HWo, Cout)
            masked = shifted * mask_ref[k]                         # zero wrapped cols
            w_tap = w2_ref[pl.ds(k * c_out, c_out), :]             # (Cout, Cout)
            acc = acc + jnp.dot(masked, w_tap,
                                preferred_element_type=jnp.float32)

        o_ref[0] = acc                                             # lane-dense store

    return kernel


def resnet_basic_block(x_nchw, p, *, stride):
    """One ResNetBasicBlock forward: (B, Cin, H, W) -> (B, Cout, H', W')."""
    b, c_in, h, w = x_nchw.shape
    c_out = p["w1"].shape[0]
    h_out = (h - 1) // stride + 1
    w_out = (w - 1) // stride + 1
    hw_out = h_out * w_out

    x_nhwc = jnp.transpose(x_nchw, (0, 2, 3, 1)).astype(jnp.float32)
    xp = jnp.pad(x_nhwc, ((0, 0), (1, 1), (1, 1), (0, 0)))
    # Activations streamed in bf16 (halves HBM bytes); matmuls accumulate in f32.
    x_col = _im2col_3x3(xp, stride, h_out, w_out).astype(jnp.bfloat16)
    xs_col = x_nhwc[:, ::stride, ::stride, :].reshape(b, hw_out, c_in)
    xs_col = xs_col.astype(jnp.bfloat16)

    # Fold inference-mode BN into conv weights (scale) + per-channel biases.
    s1, bb1 = _bn_fold(p["g1"], p["b1"], p["m1"], p["v1"])
    w1_mat = (jnp.transpose(p["w1"], (2, 3, 1, 0)).reshape(9 * c_in, c_out)
              * s1[None, :]).astype(jnp.float32)
    s2, bb2 = _bn_fold(p["g2"], p["b2"], p["m2"], p["v2"])
    w2_mat = (jnp.transpose(p["w2"], (2, 3, 1, 0)).reshape(9 * c_out, c_out)
              * s2[None, :]).astype(jnp.float32)

    if "ws" in p:   # projection shortcut (in_channels != out_channels)
        ss, bbs = _bn_fold(p["gs"], p["bs"], p["ms"], p["vs"])
        ws_mat = (p["ws"][:, :, 0, 0].T * ss[None, :]).astype(jnp.float32)
    else:           # identity shortcut
        ws_mat = jnp.eye(c_out, dtype=jnp.float32)
        bbs = jnp.zeros((c_out,), jnp.float32)

    b1_2d = bb1.reshape(1, c_out).astype(jnp.float32)
    bout_2d = (bb2 + bbs).reshape(1, c_out).astype(jnp.float32)
    masks = jnp.asarray(_tap_masks(h_out, w_out))                  # (9, HWo, 1)

    c_s = xs_col.shape[-1]
    kernel = _make_block_kernel(hw_out, w_out, c_out)

    out = pl.pallas_call(
        kernel,
        out_shape=jax.ShapeDtypeStruct((b, hw_out, c_out), jnp.float32),
        grid_spec=pltpu.PrefetchScalarGridSpec(
            num_scalar_prefetch=0,
            grid=(b,),                        # pipeline (and megacore-shard) batch
            in_specs=[
                pl.BlockSpec((1, hw_out, 9 * c_in), lambda i: (i, 0, 0)),
                pl.BlockSpec((1, hw_out, c_s), lambda i: (i, 0, 0)),
                # weights / biases / masks: constant maps -> fetched once, resident
                pl.BlockSpec((9 * c_in, c_out), lambda i: (0, 0)),
                pl.BlockSpec((1, c_out), lambda i: (0, 0)),
                pl.BlockSpec((9 * c_out, c_out), lambda i: (0, 0)),
                pl.BlockSpec((c_s, c_out), lambda i: (0, 0)),
                pl.BlockSpec((1, c_out), lambda i: (0, 0)),
                pl.BlockSpec((9, hw_out, 1), lambda i: (0, 0, 0)),
            ],
            out_specs=pl.BlockSpec((1, hw_out, c_out), lambda i: (i, 0, 0)),
            scratch_shapes=[
                pltpu.VMEM((hw_out + 2 * (w_out + 1), c_out), jnp.float32)],
        ),
        compiler_params=pltpu.CompilerParams(
            dimension_semantics=("parallel",),
            vmem_limit_bytes=48 * 1024 * 1024,   # safe on v5e/v6e/v7x; tune per gen
        ),
    )(x_col, xs_col, w1_mat, b1_2d, w2_mat, ws_mat, bout_2d, masks)

    return jnp.transpose(out.reshape(b, h_out, w_out, c_out), (0, 3, 1, 2))


def resnet_layer(x_nchw, blocks):
    """blocks: list of (params_dict, stride); applied sequentially."""
    for p, stride in blocks:
        x_nchw = resnet_basic_block(x_nchw, p, stride=stride)
    return x_nchw


# ----------------------------- reference (plain JAX) -------------------------
def _ref_bn(y, g, b, m, v):
    inv = (g / jnp.sqrt(v + _BN_EPS))[None, :, None, None]
    return (y - m[None, :, None, None]) * inv + b[None, :, None, None]


def _ref_block(x, p, stride):
    dn = ("NCHW", "OIHW", "NCHW")
    hp = lax.Precision.HIGHEST
    y = lax.conv_general_dilated(x, p["w1"], (stride, stride), ((1, 1), (1, 1)),
                                 dimension_numbers=dn, precision=hp)
    y = jnp.maximum(_ref_bn(y, p["g1"], p["b1"], p["m1"], p["v1"]), 0.0)
    y = lax.conv_general_dilated(y, p["w2"], (1, 1), ((1, 1), (1, 1)),
                                 dimension_numbers=dn, precision=hp)
    y = _ref_bn(y, p["g2"], p["b2"], p["m2"], p["v2"])
    if "ws" in p:
        r = lax.conv_general_dilated(x, p["ws"], (stride, stride),
                                     ((0, 0), (0, 0)), dimension_numbers=dn,
                                     precision=hp)
        r = _ref_bn(r, p["gs"], p["bs"], p["ms"], p["vs"])
    else:
        r = x
    return y + r


if __name__ == "__main__":
    # ResNetLayer(in_channels=4, out_channels=8, n=1) -> downsampling stride 2.
    B, C_IN, C_OUT, H, W = 2, 4, 8, 16, 16
    key = jax.random.PRNGKey(0)
    keys = jax.random.split(key, 8)

    def bn_params(k):
        k1, k2, k3, k4 = jax.random.split(k, 4)
        return (1.0 + 0.1 * jax.random.normal(k1, (C_OUT,), jnp.float32),
                0.1 * jax.random.normal(k2, (C_OUT,), jnp.float32),
                0.1 * jax.random.normal(k3, (C_OUT,), jnp.float32),
                jax.random.uniform(k4, (C_OUT,), jnp.float32, 0.5, 1.5))

    g1, b1, m1, v1 = bn_params(keys[1])
    g2, b2, m2, v2 = bn_params(keys[3])
    gs, bs, ms, vs = bn_params(keys[5])
    params = {
        "w1": 0.2 * jax.random.normal(keys[0], (C_OUT, C_IN, 3, 3), jnp.float32),
        "g1": g1, "b1": b1, "m1": m1, "v1": v1,
        "w2": 0.2 * jax.random.normal(keys[2], (C_OUT, C_OUT, 3, 3), jnp.float32),
        "g2": g2, "b2": b2, "m2": m2, "v2": v2,
        "ws": 0.2 * jax.random.normal(keys[4], (C_OUT, C_IN, 1, 1), jnp.float32),
        "gs": gs, "bs": bs, "ms": ms, "vs": vs,
    }

    x = jax.random.normal(keys[6], (B, C_IN, H, W), jnp.float32)

    stride = 2 if C_IN != C_OUT else 1            # ResNetLayer rule
    out = resnet_layer(x, [(params, stride)])
    out = jax.block_until_ready(out)

    # Reference in plain f32 JAX.  The kernel streams activations in bf16, so
    # compare against the reference evaluated on the bf16-rounded input; the
    # tolerance also covers TPU matmul precision modes.
    x_bf = x.astype(jnp.bfloat16).astype(jnp.float32)
    ref = _ref_block(x_bf, params, stride)

    assert out.shape == (B, C_OUT, H // stride, W // stride), out.shape
    assert jnp.allclose(out, ref, atol=5e-2, rtol=5e-2), (
        float(jnp.max(jnp.abs(out - ref))))
    print("KERNEL_OK")
</pallas_src>

<mosaic_0001>
module attributes {stable_mosaic.version = 11 : i64} {
  func.func @kernel(%arg0: i32, %arg1: memref<1x64x36xbf16, #tpu.memory_space<vmem>>, %arg2: memref<1x64x4xbf16, #tpu.memory_space<vmem>>, %arg3: memref<36x8xf32, #tpu.memory_space<vmem>>, %arg4: memref<1x8xf32, #tpu.memory_space<vmem>>, %arg5: memref<72x8xf32, #tpu.memory_space<vmem>>, %arg6: memref<4x8xf32, #tpu.memory_space<vmem>>, %arg7: memref<1x8xf32, #tpu.memory_space<vmem>>, %arg8: memref<9x64x1xf32, #tpu.memory_space<vmem>>, %arg9: memref<1x64x8xf32, #tpu.memory_space<vmem>>, %arg10: memref<82x8xf32, #tpu.memory_space<vmem>>) attributes {dimension_semantics = [#tpu.dimension_semantics<parallel>], iteration_bounds = array<i64: 2>, scalar_prefetch = 0 : i64, scratch_operands = 1 : i64, tpu.core_type = #tpu.core_type<tc>, window_params = [{transform_indices = @transform_0, window_bounds = array<i64: 1, 64, 36>}, {transform_indices = @transform_1, window_bounds = array<i64: 1, 64, 4>}, {pipeline_mode = #tpu.pipeline_mode<synchronous>, transform_indices = @transform_2, window_bounds = array<i64: 36, 8>}, {pipeline_mode = #tpu.pipeline_mode<synchronous>, transform_indices = @transform_3, window_bounds = array<i64: 1, 8>}, {pipeline_mode = #tpu.pipeline_mode<synchronous>, transform_indices = @transform_4, window_bounds = array<i64: 72, 8>}, {pipeline_mode = #tpu.pipeline_mode<synchronous>, transform_indices = @transform_5, window_bounds = array<i64: 4, 8>}, {pipeline_mode = #tpu.pipeline_mode<synchronous>, transform_indices = @transform_6, window_bounds = array<i64: 1, 8>}, {pipeline_mode = #tpu.pipeline_mode<synchronous>, transform_indices = @transform_7, window_bounds = array<i64: 9, 64, 1>}, {transform_indices = @transform_8, window_bounds = array<i64: 1, 64, 8>}]} {
    %c0 = arith.constant 0 : index
    %c0_0 = arith.constant 0 : index
    %c0_1 = arith.constant 0 : index
    %0 = vector.load %arg1[%c0, %c0_0, %c0_1] : memref<1x64x36xbf16, #tpu.memory_space<vmem>>, vector<1x64x36xbf16>
    %1 = vector.shape_cast %0 : vector<1x64x36xbf16> to vector<64x36xbf16>
    %c0_2 = arith.constant 0 : index
    %c0_3 = arith.constant 0 : index
    %2 = vector.load %arg3[%c0_2, %c0_3] : memref<36x8xf32, #tpu.memory_space<vmem>>, vector<36x8xf32>
    %cst = arith.constant dense<0.000000e+00> : vector<64x8xf32>
    %3 = tpu.matmul %1, %2, %cst {dimension_numbers = #tpu.dot_dimension_numbers<[1], [0], [0], [1], [0, 0, 1, 1], [], []>} : vector<64x36xbf16>, vector<36x8xf32>, vector<64x8xf32> -> vector<64x8xf32>
    %c0_4 = arith.constant 0 : index
    %c0_5 = arith.constant 0 : index
    %4 = vector.load %arg4[%c0_4, %c0_5] : memref<1x8xf32, #tpu.memory_space<vmem>>, vector<1x8xf32>
    %5 = vector.broadcast %4 : vector<1x8xf32> to vector<64x8xf32>
    %6 = arith.addf %3, %5 : vector<64x8xf32>
    %cst_6 = arith.constant 0.000000e+00 : f32
    %7 = vector.broadcast %cst_6 : f32 to vector<64x8xf32>
    %8 = arith.maximumf %6, %7 : vector<64x8xf32>
    %cst_7 = arith.constant 0.000000e+00 : f32
    %9 = vector.broadcast %cst_7 : f32 to vector<82x8xf32>
    %c0_8 = arith.constant 0 : index
    %c0_9 = arith.constant 0 : index
    %10 = vector.load %arg10[%c0_8, %c0_9] : memref<82x8xf32, #tpu.memory_space<vmem>>, vector<82x8xf32>
    tpu.vector_store %arg10[%c0_8, %c0_9], %9 {strides = array<i32>} : memref<82x8xf32, #tpu.memory_space<vmem>>, vector<82x8xf32>,
    %c9 = arith.constant 9 : index
    %c0_10 = arith.constant 0 : index
    %11 = vector.load %arg10[%c9, %c0_10] : memref<82x8xf32, #tpu.memory_space<vmem>>, vector<64x8xf32>
    tpu.vector_store %arg10[%c9, %c0_10], %8 {strides = array<i32>} : memref<82x8xf32, #tpu.memory_space<vmem>>, vector<64x8xf32>,
    %c0_11 = arith.constant 0 : index
    %c0_12 = arith.constant 0 : index
    %c0_13 = arith.constant 0 : index
    %12 = vector.load %arg2[%c0_11, %c0_12, %c0_13] : memref<1x64x4xbf16, #tpu.memory_space<vmem>>, vector<1x64x4xbf16>
    %13 = vector.shape_cast %12 : vector<1x64x4xbf16> to vector<64x4xbf16>
    %c0_14 = arith.constant 0 : index
    %c0_15 = arith.constant 0 : index
    %14 = vector.load %arg6[%c0_14, %c0_15] : memref<4x8xf32, #tpu.memory_space<vmem>>, vector<4x8xf32>
    %cst_16 = arith.constant dense<0.000000e+00> : vector<64x8xf32>
    %15 = tpu.matmul %13, %14, %cst_16 {dimension_numbers = #tpu.dot_dimension_numbers<[1], [0], [0], [1], [0, 0, 1, 1], [], []>} : vector<64x4xbf16>, vector<4x8xf32>, vector<64x8xf32> -> vector<64x8xf32>
    %c0_17 = arith.constant 0 : index
    %c0_18 = arith.constant 0 : index
    %16 = vector.load %arg7[%c0_17, %c0_18] : memref<1x8xf32, #tpu.memory_space<vmem>>, vector<1x8xf32>
    %17 = vector.broadcast %16 : vector<1x8xf32> to vector<64x8xf32>
    %18 = arith.addf %15, %17 : vector<64x8xf32>
    %c0_19 = arith.constant 0 : index
    %c0_20 = arith.constant 0 : index
    %19 = vector.load %arg10[%c0_19, %c0_20] : memref<82x8xf32, #tpu.memory_space<vmem>>, vector<64x8xf32>
    %c0_21 = arith.constant 0 : index
    %c0_22 = arith.constant 0 : index
    %c0_23 = arith.constant 0 : index
    %20 = vector.load %arg8[%c0_21, %c0_22, %c0_23] : memref<9x64x1xf32, #tpu.memory_space<vmem>>, vector<1x64x1xf32>
    %21 = vector.shape_cast %20 : vector<1x64x1xf32> to vector<64x1xf32>
    %22 = vector.broadcast %21 : vector<64x1xf32> to vector<64x8xf32>
    %23 = arith.mulf %19, %22 : vector<64x8xf32>
    %c0_24 = arith.constant 0 : index
    %c0_25 = arith.constant 0 : index
    %24 = vector.load %arg5[%c0_24, %c0_25] : memref<72x8xf32, #tpu.memory_space<vmem>>, vector<8x8xf32>
    %cst_26 = arith.constant dense<0.000000e+00> : vector<64x8xf32>
    %25 = tpu.matmul %23, %24, %cst_26 {dimension_numbers = #tpu.dot_dimension_numbers<[1], [0], [0], [1], [0, 0, 1, 1], [], []>} : vector<64x8xf32>, vector<8x8xf32>, vector<64x8xf32> -> vector<64x8xf32>
    %26 = arith.addf %18, %25 : vector<64x8xf32>
    %c1 = arith.constant 1 : index
    %c0_27 = arith.constant 0 : index
    %27 = vector.load %arg10[%c1, %c0_27] : memref<82x8xf32, #tpu.memory_space<vmem>>, vector<64x8xf32>
    %c1_28 = arith.constant 1 : index
    %c0_29 = arith.constant 0 : index
    %c0_30 = arith.constant 0 : index
    %28 = vector.load %arg8[%c1_28, %c0_29, %c0_30] : memref<9x64x1xf32, #tpu.memory_space<vmem>>, vector<1x64x1xf32>
    %29 = vector.shape_cast %28 : vector<1x64x1xf32> to vector<64x1xf32>
    %30 = vector.broadcast %29 : vector<64x1xf32> to vector<64x8xf32>
    %31 = arith.mulf %27, %30 : vector<64x8xf32>
    %c8 = arith.constant 8 : index
    %c0_31 = arith.constant 0 : index
    %32 = vector.load %arg5[%c8, %c0_31] : memref<72x8xf32, #tpu.memory_space<vmem>>, vector<8x8xf32>
    %cst_32 = arith.constant dense<0.000000e+00> : vector<64x8xf32>
    %33 = tpu.matmul %31, %32, %cst_32 {dimension_numbers = #tpu.dot_dimension_numbers<[1], [0], [0], [1], [0, 0, 1, 1], [], []>} : vector<64x8xf32>, vector<8x8xf32>, vector<64x8xf32> -> vector<64x8xf32>
    %34 = arith.addf %26, %33 : vector<64x8xf32>
    %c2 = arith.constant 2 : index
    %c0_33 = arith.constant 0 : index
    %35 = vector.load %arg10[%c2, %c0_33] : memref<82x8xf32, #tpu.memory_space<vmem>>, vector<64x8xf32>
    %c2_34 = arith.constant 2 : index
    %c0_35 = arith.constant 0 : index
    %c0_36 = arith.constant 0 : index
    %36 = vector.load %arg8[%c2_34, %c0_35, %c0_36] : memref<9x64x1xf32, #tpu.memory_space<vmem>>, vector<1x64x1xf32>
    %37 = vector.shape_cast %36 : vector<1x64x1xf32> to vector<64x1xf32>
    %38 = vector.broadcast %37 : vector<64x1xf32> to vector<64x8xf32>
    %39 = arith.mulf %35, %38 : vector<64x8xf32>
    %c16 = arith.constant 16 : index
    %c0_37 = arith.constant 0 : index
    %40 = vector.load %arg5[%c16, %c0_37] : memref<72x8xf32, #tpu.memory_space<vmem>>, vector<8x8xf32>
    %cst_38 = arith.constant dense<0.000000e+00> : vector<64x8xf32>
    %41 = tpu.matmul %39, %40, %cst_38 {dimension_numbers = #tpu.dot_dimension_numbers<[1], [0], [0], [1], [0, 0, 1, 1], [], []>} : vector<64x8xf32>, vector<8x8xf32>, vector<64x8xf32> -> vector<64x8xf32>
    %42 = arith.addf %34, %41 : vector<64x8xf32>
    %c8_39 = arith.constant 8 : index
    %c0_40 = arith.constant 0 : index
    %43 = vector.load %arg10[%c8_39, %c0_40] : memref<82x8xf32, #tpu.memory_space<vmem>>, vector<64x8xf32>
    %c3 = arith.constant 3 : index
    %c0_41 = arith.constant 0 : index
    %c0_42 = arith.constant 0 : index
    %44 = vector.load %arg8[%c3, %c0_41, %c0_42] : memref<9x64x1xf32, #tpu.memory_space<vmem>>, vector<1x64x1xf32>
    %45 = vector.shape_cast %44 : vector<1x64x1xf32> to vector<64x1xf32>
    %46 = vector.broadcast %45 : vector<64x1xf32> to vector<64x8xf32>
    %47 = arith.mulf %43, %46 : vector<64x8xf32>
    %c24 = arith.constant 24 : index
    %c0_43 = arith.constant 0 : index
    %48 = vector.load %arg5[%c24, %c0_43] : memref<72x8xf32, #tpu.memory_space<vmem>>, vector<8x8xf32>
    %cst_44 = arith.constant dense<0.000000e+00> : vector<64x8xf32>
    %49 = tpu.matmul %47, %48, %cst_44 {dimension_numbers = #tpu.dot_dimension_numbers<[1], [0], [0], [1], [0, 0, 1, 1], [], []>} : vector<64x8xf32>, vector<8x8xf32>, vector<64x8xf32> -> vector<64x8xf32>
    %50 = arith.addf %42, %49 : vector<64x8xf32>
    %c9_45 = arith.constant 9 : index
    %c0_46 = arith.constant 0 : index
    %51 = vector.load %arg10[%c9_45, %c0_46] : memref<82x8xf32, #tpu.memory_space<vmem>>, vector<64x8xf32>
    %c4 = arith.constant 4 : index
    %c0_47 = arith.constant 0 : index
    %c0_48 = arith.constant 0 : index
    %52 = vector.load %arg8[%c4, %c0_47, %c0_48] : memref<9x64x1xf32, #tpu.memory_space<vmem>>, vector<1x64x1xf32>
    %53 = vector.shape_cast %52 : vector<1x64x1xf32> to vector<64x1xf32>
    %54 = vector.broadcast %53 : vector<64x1xf32> to vector<64x8xf32>
    %55 = arith.mulf %51, %54 : vector<64x8xf32>
    %c32 = arith.constant 32 : index
    %c0_49 = arith.constant 0 : index
    %56 = vector.load %arg5[%c32, %c0_49] : memref<72x8xf32, #tpu.memory_space<vmem>>, vector<8x8xf32>
    %cst_50 = arith.constant dense<0.000000e+00> : vector<64x8xf32>
    %57 = tpu.matmul %55, %56, %cst_50 {dimension_numbers = #tpu.dot_dimension_numbers<[1], [0], [0], [1], [0, 0, 1, 1], [], []>} : vector<64x8xf32>, vector<8x8xf32>, vector<64x8xf32> -> vector<64x8xf32>
    %58 = arith.addf %50, %57 : vector<64x8xf32>
    %c10 = arith.constant 10 : index
    %c0_51 = arith.constant 0 : index
    %59 = vector.load %arg10[%c10, %c0_51] : memref<82x8xf32, #tpu.memory_space<vmem>>, vector<64x8xf32>
    %c5 = arith.constant 5 : index
    %c0_52 = arith.constant 0 : index
    %c0_53 = arith.constant 0 : index
    %60 = vector.load %arg8[%c5, %c0_52, %c0_53] : memref<9x64x1xf32, #tpu.memory_space<vmem>>, vector<1x64x1xf32>
    %61 = vector.shape_cast %60 : vector<1x64x1xf32> to vector<64x1xf32>
    %62 = vector.broadcast %61 : vector<64x1xf32> to vector<64x8xf32>
    %63 = arith.mulf %59, %62 : vector<64x8xf32>
    %c40 = arith.constant 40 : index
    %c0_54 = arith.constant 0 : index
    %64 = vector.load %arg5[%c40, %c0_54] : memref<72x8xf32, #tpu.memory_space<vmem>>, vector<8x8xf32>
    %cst_55 = arith.constant dense<0.000000e+00> : vector<64x8xf32>
    %65 = tpu.matmul %63, %64, %cst_55 {dimension_numbers = #tpu.dot_dimension_numbers<[1], [0], [0], [1], [0, 0, 1, 1], [], []>} : vector<64x8xf32>, vector<8x8xf32>, vector<64x8xf32> -> vector<64x8xf32>
    %66 = arith.addf %58, %65 : vector<64x8xf32>
    %c16_56 = arith.constant 16 : index
    %c0_57 = arith.constant 0 : index
    %67 = vector.load %arg10[%c16_56, %c0_57] : memref<82x8xf32, #tpu.memory_space<vmem>>, vector<64x8xf32>
    %c6 = arith.constant 6 : index
    %c0_58 = arith.constant 0 : index
    %c0_59 = arith.constant 0 : index
    %68 = vector.load %arg8[%c6, %c0_58, %c0_59] : memref<9x64x1xf32, #tpu.memory_space<vmem>>, vector<1x64x1xf32>
    %69 = vector.shape_cast %68 : vector<1x64x1xf32> to vector<64x1xf32>
    %70 = vector.broadcast %69 : vector<64x1xf32> to vector<64x8xf32>
    %71 = arith.mulf %67, %70 : vector<64x8xf32>
    %c48 = arith.constant 48 : index
    %c0_60 = arith.constant 0 : index
    %72 = vector.load %arg5[%c48, %c0_60] : memref<72x8xf32, #tpu.memory_space<vmem>>, vector<8x8xf32>
    %cst_61 = arith.constant dense<0.000000e+00> : vector<64x8xf32>
    %73 = tpu.matmul %71, %72, %cst_61 {dimension_numbers = #tpu.dot_dimension_numbers<[1], [0], [0], [1], [0, 0, 1, 1], [], []>} : vector<64x8xf32>, vector<8x8xf32>, vector<64x8xf32> -> vector<64x8xf32>
    %74 = arith.addf %66, %73 : vector<64x8xf32>
    %c17 = arith.constant 17 : index
    %c0_62 = arith.constant 0 : index
    %75 = vector.load %arg10[%c17, %c0_62] : memref<82x8xf32, #tpu.memory_space<vmem>>, vector<64x8xf32>
    %c7 = arith.constant 7 : index
    %c0_63 = arith.constant 0 : index
    %c0_64 = arith.constant 0 : index
    %76 = vector.load %arg8[%c7, %c0_63, %c0_64] : memref<9x64x1xf32, #tpu.memory_space<vmem>>, vector<1x64x1xf32>
    %77 = vector.shape_cast %76 : vector<1x64x1xf32> to vector<64x1xf32>
    %78 = vector.broadcast %77 : vector<64x1xf32> to vector<64x8xf32>
    %79 = arith.mulf %75, %78 : vector<64x8xf32>
    %c56 = arith.constant 56 : index
    %c0_65 = arith.constant 0 : index
    %80 = vector.load %arg5[%c56, %c0_65] : memref<72x8xf32, #tpu.memory_space<vmem>>, vector<8x8xf32>
    %cst_66 = arith.constant dense<0.000000e+00> : vector<64x8xf32>
    %81 = tpu.matmul %79, %80, %cst_66 {dimension_numbers = #tpu.dot_dimension_numbers<[1], [0], [0], [1], [0, 0, 1, 1], [], []>} : vector<64x8xf32>, vector<8x8xf32>, vector<64x8xf32> -> vector<64x8xf32>
    %82 = arith.addf %74, %81 : vector<64x8xf32>
    %c18 = arith.constant 18 : index
    %c0_67 = arith.constant 0 : index
    %83 = vector.load %arg10[%c18, %c0_67] : memref<82x8xf32, #tpu.memory_space<vmem>>, vector<64x8xf32>
    %c8_68 = arith.constant 8 : index
    %c0_69 = arith.constant 0 : index
    %c0_70 = arith.constant 0 : index
    %84 = vector.load %arg8[%c8_68, %c0_69, %c0_70] : memref<9x64x1xf32, #tpu.memory_space<vmem>>, vector<1x64x1xf32>
    %85 = vector.shape_cast %84 : vector<1x64x1xf32> to vector<64x1xf32>
    %86 = vector.broadcast %85 : vector<64x1xf32> to vector<64x8xf32>
    %87 = arith.mulf %83, %86 : vector<64x8xf32>
    %c64 = arith.constant 64 : index
    %c0_71 = arith.constant 0 : index
    %88 = vector.load %arg5[%c64, %c0_71] : memref<72x8xf32, #tpu.memory_space<vmem>>, vector<8x8xf32>
    %cst_72 = arith.constant dense<0.000000e+00> : vector<64x8xf32>
    %89 = tpu.matmul %87, %88, %cst_72 {dimension_numbers = #tpu.dot_dimension_numbers<[1], [0], [0], [1], [0, 0, 1, 1], [], []>} : vector<64x8xf32>, vector<8x8xf32>, vector<64x8xf32> -> vector<64x8xf32>
    %90 = arith.addf %82, %89 : vector<64x8xf32>
    %c0_73 = arith.constant 0 : index
    %c0_74 = arith.constant 0 : index
    %c0_75 = arith.constant 0 : index
    %91 = vector.load %arg9[%c0_73, %c0_74, %c0_75] : memref<1x64x8xf32, #tpu.memory_space<vmem>>, vector<1x64x8xf32>
    %92 = vector.shape_cast %91 : vector<1x64x8xf32> to vector<64x8xf32>
    %93 = vector.shape_cast %90 : vector<64x8xf32> to vector<1x64x8xf32>
    tpu.vector_store %arg9[%c0_73, %c0_74, %c0_75], %93 {strides = array<i32>} : memref<1x64x8xf32, #tpu.memory_space<vmem>>, vector<1x64x8xf32>,
    return
  }
  func.func @transform_0(%arg0: i32) -> (i32, i32, i32) {
    %c0_i32 = arith.constant 0 : i32
    %c0_i32_0 = arith.constant 0 : i32
    %c0_i32_1 = arith.constant 0 : i32
    return %arg0, %c0_i32, %c0_i32_0 : i32, i32, i32
  }
  func.func @transform_1(%arg0: i32) -> (i32, i32, i32) {
    %c0_i32 = arith.constant 0 : i32
    %c0_i32_0 = arith.constant 0 : i32
    %c0_i32_1 = arith.constant 0 : i32
    return %arg0, %c0_i32, %c0_i32_0 : i32, i32, i32
  }
  func.func @transform_2(%arg0: i32) -> (i32, i32) {
    %c0_i32 = arith.constant 0 : i32
    %c0_i32_0 = arith.constant 0 : i32
    %c0_i32_1 = arith.constant 0 : i32
    return %c0_i32, %c0_i32_0 : i32, i32
  }
  func.func @transform_3(%arg0: i32) -> (i32, i32) {
    %c0_i32 = arith.constant 0 : i32
    %c0_i32_0 = arith.constant 0 : i32
    %c0_i32_1 = arith.constant 0 : i32
    return %c0_i32, %c0_i32_0 : i32, i32
  }
  func.func @transform_4(%arg0: i32) -> (i32, i32) {
    %c0_i32 = arith.constant 0 : i32
    %c0_i32_0 = arith.constant 0 : i32
    %c0_i32_1 = arith.constant 0 : i32
    return %c0_i32, %c0_i32_0 : i32, i32
  }
  func.func @transform_5(%arg0: i32) -> (i32, i32) {
    %c0_i32 = arith.constant 0 : i32
    %c0_i32_0 = arith.constant 0 : i32
    %c0_i32_1 = arith.constant 0 : i32
    return %c0_i32, %c0_i32_0 : i32, i32
  }
  func.func @transform_6(%arg0: i32) -> (i32, i32) {
    %c0_i32 = arith.constant 0 : i32
    %c0_i32_0 = arith.constant 0 : i32
    %c0_i32_1 = arith.constant 0 : i32
    return %c0_i32, %c0_i32_0 : i32, i32
  }
  func.func @transform_7(%arg0: i32) -> (i32, i32, i32) {
    %c0_i32 = arith.constant 0 : i32
    %c0_i32_0 = arith.constant 0 : i32
    %c0_i32_1 = arith.constant 0 : i32
    %c0_i32_2 = arith.constant 0 : i32
    return %c0_i32, %c0_i32_0, %c0_i32_1 : i32, i32, i32
  }
  func.func @transform_8(%arg0: i32) -> (i32, i32, i32) {
    %c0_i32 = arith.constant 0 : i32
    %c0_i32_0 = arith.constant 0 : i32
    %c0_i32_1 = arith.constant 0 : i32
    return %arg0, %c0_i32, %c0_i32_0 : i32, i32, i32
  }
}

</mosaic_0001>

<llo_original>
// kernel: tpu_custom_call.1
$region0: #{tpu_custom_call.1}
  #allocation0 [shape = 'u32[]', space=smem, size = 0x4, offset = 0x4, fixed_abs, tag = 'smem constant byte address 0x4 - core index']
  #allocation1 [shape = 'u32[72,128]{1,0:T(1,128)}', space=vmem, size = 0x9000, scoped, tag = 'internal scratch']
  #allocation2 [shape = 'f32[82,8]{1,0:T(8,128)}', space=vmem, size = 0xb000, scoped, tag = 'scratch operand']
  %s0 = inlined_call_operand.vmem [shape: bf16[2,64,36], index: 0, kind: input, shape index: {}]
  %s1 = inlined_call_operand.vmem [shape: bf16[2,64,4], index: 1, kind: input, shape index: {}]
  %s2 = inlined_call_operand.vmem [shape: f32[36,8], index: 2, kind: input, shape index: {}]
  %s3 = inlined_call_operand.vmem [shape: f32[1,8], index: 3, kind: input, shape index: {}]
  %s4 = inlined_call_operand.vmem [shape: f32[72,8], index: 4, kind: input, shape index: {}]
  %s5 = inlined_call_operand.vmem [shape: f32[4,8], index: 5, kind: input, shape index: {}]
  %s6 = inlined_call_operand.vmem [shape: f32[1,8], index: 6, kind: input, shape index: {}]
  %s7 = inlined_call_operand.vmem [shape: f32[9,64,1], index: 7, kind: input, shape index: {}]
  %s8 = inlined_call_operand.vmem [shape: f32[2,64,8], index: 8, kind: output, shape index: {}]
  %s9 = sld [smem:[#allocation0]]
  $region65: #{tpu_custom_call.1} parent=0
    _
  %s11 = ssub.s32 1, %s9
  %s12 = scalar_select 0, %s11, %s9
  loop: start=0, step=1, limit=4
  $region2: #{tpu_custom_call.1} parent=0 // loop_pre_header
    _
  $region3: #{tpu_custom_call.1} parent=0 // loop_header
    %s14 = sphi 0, %s18
    %p15 = scmp.ge.s32.totalorder %s14, 4
    %s24 = sphi 0, %s26
    %s27 = sphi 0, %s24
    %s28 = sphi 0, %s27
    %s44 = sphi 0, %s28
    %s50 = sphi 0, %s52
    %s53 = sphi 0, %s50
    %s54 = sphi 0, %s53
    %s70 = sphi 0, %s54
    %s74 = sphi 0, %s74
    %s76 = sphi 0, %s74
    %s77 = sphi 0, %s76
    %s91 = sphi 0, %s77
    %s95 = sphi 0, %s95
    %s97 = sphi 0, %s95
    %s98 = sphi 0, %s97
    %s112 = sphi 0, %s98
    %s116 = sphi 0, %s116
    %s118 = sphi 0, %s116
    %s119 = sphi 0, %s118
    %s133 = sphi 0, %s119
    %s137 = sphi 0, %s137
    %s139 = sphi 0, %s137
    %s140 = sphi 0, %s139
    %s154 = sphi 0, %s140
    %s158 = sphi 0, %s158
    %s160 = sphi 0, %s158
    %s161 = sphi 0, %s160
    %s175 = sphi 0, %s161
    %s179 = sphi 0, %s179
    %s181 = sphi 0, %s179
    %s182 = sphi 0, %s181
    %s196 = sphi 0, %s182
    %s202 = sphi 0, %s204
    %s205 = sphi 0, %s202
    %s206 = sphi 0, %s205
    %s222 = sphi 0, %s206
  $region4: #{tpu_custom_call.1} parent=0 // loop_header_branch
    %17 = sbr.rel (%p15) target = $region8
  $region5: #{tpu_custom_call.1} parent=0 // loop_body
    %s19 = ssub.s32 %s14, 1
    %s20 = ssub.s32 %s14, 2
    %s21 = sadd.s32 %s14, 1
    %s22 = ssub.s32 %s14, %s21
    %p23 = scmp.eq.s32.totalorder %s22, 0
    %s25 = sadd.s32 %s24, 1
    %s26 = scalar_select %p23, %s24, %s25
    %p29 = pneg %p23
    %p30 = scmp.eq.s32.totalorder %s14, 1
    %p31 = por %p29, %p30
    %p32 = scmp.ne.s32.totalorder %s24, %s27
    %p33 = scmp.eq.s32.totalorder %s14, 0
    %p34 = por %p32, %p33
    %p35 = scmp.ne.s32.totalorder %s24, %s27
    %p36 = scmp.eq.s32.totalorder %s19, 1
    %p37 = por %p35, %p36
    %p38 = scmp.ne.s32.totalorder %s27, %s28
    %p39 = scmp.eq.s32.totalorder %s19, 0
    %p40 = por %p38, %p39
    %p41 = scmp.ne.s32.totalorder %s27, %s28
    %p42 = scmp.eq.s32.totalorder %s20, 1
    %p43 = por %p41, %p42
    %p45 = scmp.ne.s32.totalorder %s28, %s44
    %p46 = scmp.eq.s32.totalorder %s20, 0
    %p47 = por %p45, %p46
    %s48 = ssub.s32 %s14, %s21
    %p49 = scmp.eq.s32.totalorder %s48, 0
    %s51 = sadd.s32 %s50, 1
    %s52 = scalar_select %p49, %s50, %s51
    %p55 = pneg %p49
    %p56 = scmp.eq.s32.totalorder %s14, 1
    %p57 = por %p55, %p56
    %p58 = scmp.ne.s32.totalorder %s50, %s53
    %p59 = scmp.eq.s32.totalorder %s14, 0
    %p60 = por %p58, %p59
    %p61 = scmp.ne.s32.totalorder %s50, %s53
    %p62 = scmp.eq.s32.totalorder %s19, 1
    %p63 = por %p61, %p62
    %p64 = scmp.ne.s32.totalorder %s53, %s54
    %p65 = scmp.eq.s32.totalorder %s19, 0
    %p66 = por %p64, %p65
    %p67 = scmp.ne.s32.totalorder %s53, %s54
    %p68 = scmp.eq.s32.totalorder %s20, 1
    %p69 = por %p67, %p68
    %p71 = scmp.ne.s32.totalorder %s54, %s70
    %p72 = scmp.eq.s32.totalorder %s20, 0
    %p73 = por %p71, %p72
    %s75 = sadd.s32 %s74, 1
    %p78 = scmp.eq.s32.totalorder %s14, 1
    %p79 = scmp.ne.s32.totalorder %s74, %s76
    %p80 = scmp.eq.s32.totalorder %s14, 0
    %p81 = por %p79, %p80
    %p82 = scmp.ne.s32.totalorder %s74, %s76
    %p83 = scmp.eq.s32.totalorder %s19, 1
    %p84 = por %p82, %p83
    %p85 = scmp.ne.s32.totalorder %s76, %s77
    %p86 = scmp.eq.s32.totalorder %s19, 0
    %p87 = por %p85, %p86
    %p88 = scmp.ne.s32.totalorder %s76, %s77
    %p89 = scmp.eq.s32.totalorder %s20, 1
    %p90 = por %p88, %p89
    %p92 = scmp.ne.s32.totalorder %s77, %s91
    %p93 = scmp.eq.s32.totalorder %s20, 0
    %p94 = por %p92, %p93
    %s96 = sadd.s32 %s95, 1
    %p99 = scmp.eq.s32.totalorder %s14, 1
    %p100 = scmp.ne.s32.totalorder %s95, %s97
    %p101 = scmp.eq.s32.totalorder %s14, 0
    %p102 = por %p100, %p101
    %p103 = scmp.ne.s32.totalorder %s95, %s97
    %p104 = scmp.eq.s32.totalorder %s19, 1
    %p105 = por %p103, %p104
    %p106 = scmp.ne.s32.totalorder %s97, %s98
    %p107 = scmp.eq.s32.totalorder %s19, 0
    %p108 = por %p106, %p107
    %p109 = scmp.ne.s32.totalorder %s97, %s98
    %p110 = scmp.eq.s32.totalorder %s20, 1
    %p111 = por %p109, %p110
    %p113 = scmp.ne.s32.totalorder %s98, %s112
    %p114 = scmp.eq.s32.totalorder %s20, 0
    %p115 = por %p113, %p114
    %s117 = sadd.s32 %s116, 1
    %p120 = scmp.eq.s32.totalorder %s14, 1
    %p121 = scmp.ne.s32.totalorder %s116, %s118
    %p122 = scmp.eq.s32.totalorder %s14, 0
    %p123 = por %p121, %p122
    %p124 = scmp.ne.s32.totalorder %s116, %s118
    %p125 = scmp.eq.s32.totalorder %s19, 1
    %p126 = por %p124, %p125
    %p127 = scmp.ne.s32.totalorder %s118, %s119
    %p128 = scmp.eq.s32.totalorder %s19, 0
    %p129 = por %p127, %p128
    %p130 = scmp.ne.s32.totalorder %s118, %s119
    %p131 = scmp.eq.s32.totalorder %s20, 1
    %p132 = por %p130, %p131
    %p134 = scmp.ne.s32.totalorder %s119, %s133
    %p135 = scmp.eq.s32.totalorder %s20, 0
    %p136 = por %p134, %p135
    %s138 = sadd.s32 %s137, 1
    %p141 = scmp.eq.s32.totalorder %s14, 1
    %p142 = scmp.ne.s32.totalorder %s137, %s139
    %p143 = scmp.eq.s32.totalorder %s14, 0
    %p144 = por %p142, %p143
    %p145 = scmp.ne.s32.totalorder %s137, %s139
    %p146 = scmp.eq.s32.totalorder %s19, 1
    %p147 = por %p145, %p146
    %p148 = scmp.ne.s32.totalorder %s139, %s140
    %p149 = scmp.eq.s32.totalorder %s19, 0
    %p150 = por %p148, %p149
    %p151 = scmp.ne.s32.totalorder %s139, %s140
    %p152 = scmp.eq.s32.totalorder %s20, 1
    %p153 = por %p151, %p152
    %p155 = scmp.ne.s32.totalorder %s140, %s154
    %p156 = scmp.eq.s32.totalorder %s20, 0
    %p157 = por %p155, %p156
    %s159 = sadd.s32 %s158, 1
    %p162 = scmp.eq.s32.totalorder %s14, 1
    %p163 = scmp.ne.s32.totalorder %s158, %s160
    %p164 = scmp.eq.s32.totalorder %s14, 0
    %p165 = por %p163, %p164
    %p166 = scmp.ne.s32.totalorder %s158, %s160
    %p167 = scmp.eq.s32.totalorder %s19, 1
    %p168 = por %p166, %p167
    %p169 = scmp.ne.s32.totalorder %s160, %s161
    %p170 = scmp.eq.s32.totalorder %s19, 0
    %p171 = por %p169, %p170
    %p172 = scmp.ne.s32.totalorder %s160, %s161
    %p173 = scmp.eq.s32.totalorder %s20, 1
    %p174 = por %p172, %p173
    %p176 = scmp.ne.s32.totalorder %s161, %s175
    %p177 = scmp.eq.s32.totalorder %s20, 0
    %p178 = por %p176, %p177
    %s180 = sadd.s32 %s179, 1
    %p183 = scmp.eq.s32.totalorder %s14, 1
    %p184 = scmp.ne.s32.totalorder %s179, %s181
    %p185 = scmp.eq.s32.totalorder %s14, 0
    %p186 = por %p184, %p185
    %p187 = scmp.ne.s32.totalorder %s179, %s181
    %p188 = scmp.eq.s32.totalorder %s19, 1
    %p189 = por %p187, %p188
    %p190 = scmp.ne.s32.totalorder %s181, %s182
    %p191 = scmp.eq.s32.totalorder %s19, 0
    %p192 = por %p190, %p191
    %p193 = scmp.ne.s32.totalorder %s181, %s182
    %p194 = scmp.eq.s32.totalorder %s20, 1
    %p195 = por %p193, %p194
    %p197 = scmp.ne.s32.totalorder %s182, %s196
    %p198 = scmp.eq.s32.totalorder %s20, 0
    %p199 = por %p197, %p198
    %s200 = ssub.s32 %s14, %s21
    %p201 = scmp.eq.s32.totalorder %s200, 0
    %s203 = sadd.s32 %s202, 1
    %s204 = scalar_select %p201, %s202, %s203
    %p207 = pneg %p201
    %p208 = scmp.eq.s32.totalorder %s14, 1
    %p209 = por %p207, %p208
    %p210 = scmp.ne.s32.totalorder %s202, %s205
    %p211 = scmp.eq.s32.totalorder %s14, 0
    %p212 = por %p210, %p211
    %p213 = scmp.ne.s32.totalorder %s202, %s205
    %p214 = scmp.eq.s32.totalorder %s19, 1
    %p215 = por %p213, %p214
    %p216 = scmp.ne.s32.totalorder %s205, %s206
    %p217 = scmp.eq.s32.totalorder %s19, 0
    %p218 = por %p216, %p217
    %p219 = scmp.ne.s32.totalorder %s205, %s206
    %p220 = scmp.eq.s32.totalorder %s20, 1
    %p221 = por %p219, %p220
    %p223 = scmp.ne.s32.totalorder %s206, %s222
    %p224 = scmp.eq.s32.totalorder %s20, 0
    %p225 = por %p223, %p224
    %p226 = scmp.le.s32.totalorder 1, %s14
    %p227 = scmp.lt.s32.totalorder %s14, 3
    %p228 = pnand %p226, %p227
    %p229 = pneg %p228
    // Predicated region
    $region9: #{tpu_custom_call.1} parent=5 // pred_check
      _
    $region10: #{tpu_custom_call.1} parent=5 // pred_check_branch
      %231 = sbr.rel (%p228) target = $region12
    $region11: #{tpu_custom_call.1} parent=5 // pred_region
      %s232 = ssub.s32 %s14, 1
      // Predicated region
      $region13: #{tpu_custom_call.1} parent=11 // pred_check
        %p233 = pneg %p87
      $region14: #{tpu_custom_call.1} parent=11 // pred_check_branch
        %235 = sbr.rel (%p233) target = $region16
      $region15: #{tpu_custom_call.1} parent=11 // pred_region
        _
      $region16: #{tpu_custom_call.1} parent=11 // pred_fallthru
        _
      // Predicated region
      $region17: #{tpu_custom_call.1} parent=11 // pred_check
        %p236 = pneg %p108
      $region18: #{tpu_custom_call.1} parent=11 // pred_check_branch
        %238 = sbr.rel (%p236) target = $region20
      $region19: #{tpu_custom_call.1} parent=11 // pred_region
        _
      $region20: #{tpu_custom_call.1} parent=11 // pred_fallthru
        _
      // Predicated region
      $region21: #{tpu_custom_call.1} parent=11 // pred_check
        %p239 = pneg %p129
      $region22: #{tpu_custom_call.1} parent=11 // pred_check_branch
        %241 = sbr.rel (%p239) target = $region24
      $region23: #{tpu_custom_call.1} parent=11 // pred_region
        _
      $region24: #{tpu_custom_call.1} parent=11 // pred_fallthru
        _
      // Predicated region
      $region25: #{tpu_custom_call.1} parent=11 // pred_check
        %p242 = pneg %p150
      $region26: #{tpu_custom_call.1} parent=11 // pred_check_branch
        %244 = sbr.rel (%p242) target = $region28
      $region27: #{tpu_custom_call.1} parent=11 // pred_region
        _
      $region28: #{tpu_custom_call.1} parent=11 // pred_fallthru
        _
      // Predicated region
      $region29: #{tpu_custom_call.1} parent=11 // pred_check
        %p245 = pneg %p171
      $region30: #{tpu_custom_call.1} parent=11 // pred_check_branch
        %247 = sbr.rel (%p245) target = $region32
      $region31: #{tpu_custom_call.1} parent=11 // pred_region
        _
      $region32: #{tpu_custom_call.1} parent=11 // pred_fallthru
        _
      // Predicated region
      $region33: #{tpu_custom_call.1} parent=11 // pred_check
        %p248 = pneg %p192
      $region34: #{tpu_custom_call.1} parent=11 // pred_check_branch
        %250 = sbr.rel (%p248) target = $region36
      $region35: #{tpu_custom_call.1} parent=11 // pred_region
        _
      $region36: #{tpu_custom_call.1} parent=11 // pred_fallthru
        _
    $region12: #{tpu_custom_call.1} parent=5 // pred_fallthru
      _
    %p251 = scmp.lt.s32.totalorder %s14, 2
    // Predicated region
    $region37: #{tpu_custom_call.1} parent=5 // pred_check
      %p252 = pneg %p251
    $region38: #{tpu_custom_call.1} parent=5 // pred_check_branch
      %254 = sbr.rel (%p252) target = $region40
    $region39: #{tpu_custom_call.1} parent=5 // pred_region
      // Predicated region
      $region41: #{tpu_custom_call.1} parent=39 // pred_check
        %p255 = pneg %p34
      $region42: #{tpu_custom_call.1} parent=39 // pred_check_branch
        %257 = sbr.rel (%p255) target = $region44
      $region43: #{tpu_custom_call.1} parent=39 // pred_region
        %p258 = scmp.lt.s32.totalorder %s14, 1
        %s259 = scalar_select %p258, %s14, 1
        %s260 = smul.addr %s259, 8
        %s261 = smul.addr %s260, 4
        %s262 = scalar_lea.vmem %s0, %s261
      $region44: #{tpu_custom_call.1} parent=39 // pred_fallthru
        _
      // Predicated region
      $region45: #{tpu_custom_call.1} parent=39 // pred_check
        %p263 = pneg %p60
      $region46: #{tpu_custom_call.1} parent=39 // pred_check_branch
        %265 = sbr.rel (%p263) target = $region48
      $region47: #{tpu_custom_call.1} parent=39 // pred_region
        %p266 = scmp.lt.s32.totalorder %s14, 1
        %s267 = scalar_select %p266, %s14, 1
        %s268 = smul.addr %s267, 8
        %s269 = smul.addr %s268, 4
        %s270 = scalar_lea.vmem %s1, %s269
      $region48: #{tpu_custom_call.1} parent=39 // pred_fallthru
        _
    $region40: #{tpu_custom_call.1} parent=5 // pred_fallthru
      _
    %p271 = scmp.le.s32.totalorder 1, %s14
    %p272 = scmp.lt.s32.totalorder %s14, 3
    %p273 = pnand %p271, %p272
    %p274 = pneg %p273
    // Predicated region
    $region49: #{tpu_custom_call.1} parent=5 // pred_check
      _
    $region50: #{tpu_custom_call.1} parent=5 // pred_check_branch
      %276 = sbr.rel (%p273) target = $region52
    $region51: #{tpu_custom_call.1} parent=5 // pred_region
      %s277 = ssub.s32 %s14, 1
      %p278 = scmp.lt.s32.totalorder %s19, 1
      %s279 = scalar_select %p278, %s19, 1
      %s280 = smul.addr %s279, 8
      %s281 = smul.addr %s280, 4
      %s282 = scalar_lea.vmem %s0, %s281
      %p283 = pneg %p40
      %p284 = pneg %p37
      %p285 = scmp.lt.s32.totalorder %s19, 1
      %s286 = scalar_select %p285, %s19, 1
      %s287 = smul.addr %s286, 8
      %s288 = smul.addr %s287, 4
      %s289 = scalar_lea.vmem %s1, %s288
      %p290 = pneg %p66
      %p291 = pneg %p63
      %p292 = pneg %p87
      %p293 = pneg %p84
      %p294 = pneg %p108
      %p295 = pneg %p105
      %p296 = pneg %p129
      %p297 = pneg %p126
      %p298 = pneg %p150
      %p299 = pneg %p147
      %p300 = pneg %p171
      %p301 = pneg %p168
      %p302 = pneg %p192
      %p303 = pneg %p189
      %p304 = pneg %p218
      %p305 = pneg %p215
      %p306 = scmp.lt.s32.totalorder %s19, 1
      %s307 = scalar_select %p306, %s19, 1
      %s308 = smul.addr %s307, 8
      %s309 = smul.addr %s308, 8
      %s310 = scalar_lea.vmem %s8, %s309
      %p311 = scmp.lt.s32.totalorder %s19, 1
      %s312 = scalar_select %p311, %s19, 1
      %s313 = smul.addr %s312, 8
      %s314 = smul.addr %s313, 4
      %s315 = scalar_lea.vmem %s0, %s314
      %p316 = scmp.lt.s32.totalorder %s19, 1
      %s317 = scalar_select %p316, %s19, 1
      %s318 = smul.addr %s317, 8
      %s319 = smul.addr %s318, 4
      %s320 = scalar_lea.vmem %s1, %s319
      %p321 = scmp.lt.s32.totalorder %s19, 1
      %s322 = scalar_select %p321, %s19, 1
      %s323 = smul.addr %s322, 8
      %s324 = smul.addr %s323, 8
      %s325 = scalar_lea.vmem %s8, %s324
      %v326 = vld [vmem:[%s315] sm:$0xf]
      %v327 = vld [vmem:[%s315 + $0x4] sm:$0xf]
      %v328 = vld [vmem:[%s315 + $0x8] sm:$0xf]
      %v329 = vld [vmem:[%s315 + $0xc] sm:$0xf]
      %v330 = vld [vmem:[%s315 + $0x10] sm:$0xf]
      %v331 = vld [vmem:[%s315 + $0x14] sm:$0xf]
      %v332 = vld [vmem:[%s315 + $0x18] sm:$0xf]
      %v333 = vld [vmem:[%s315 + $0x1c] sm:$0xf]
      %v334 = vld [vmem:[%s2] sm:$0xff]
      %v335 = vld [vmem:[%s2 + $0x8] sm:$0xff]
      %v336 = vld [vmem:[%s2 + $0x10] sm:$0xff]
      %v337 = vld [vmem:[%s2 + $0x18] sm:$0xff]
      %v338 = vld [vmem:[%s2 + $0x20] sm:$0xf]
      %v339 = vld [vmem:[%s3] sm:$0x1]
      %v341 = vperm.slane %v339, 0
      %v351 = vunpack.c.l.b16 %v326
      %v352 = vunpack.c.l.b16 %v327
      %v353 = vunpack.c.l.b16 %v328
      %v354 = vunpack.c.l.b16 %v329
      %v355 = vunpack.c.l.b16 %v330
      %v356 = vunpack.c.l.b16 %v331
      %v357 = vunpack.c.l.b16 %v332
      %v358 = vunpack.c.l.b16 %v333
      %v359 = vpack.c.b16 %v352, %v351
      %v360 = vpack.c.b16 %v354, %v353
      %v361 = vpack.c.b16 %v356, %v355
      %v362 = vpack.c.b16 %v358, %v357
      %vm363 = vcmask 293888
      %v365 = vsel %vm363, %v359, 0
      %v368 = vsel %vm363, %v360, 0
      %v371 = vsel %vm363, %v361, 0
      %v374 = vsel %vm363, %v362, 0
      %vm376 = vcmask 1043456
      %v378 = vsel %vm376, %v338, 0
      %380 = vmatpush.msra.mxu0 0.0
      %381 = vmatpush.msra.mxu0 0.0
      %382 = vmatpush.msra.mxu0 0.0
      %383 = vmatpush.msra.mxu0 0.0
      %384 = vmatpush.msra.mxu0 0.0
      %385 = vmatpush.msra.mxu0 0.0
      %386 = vmatpush.msra.mxu0 0.0
      %387 = vmatpush.msra.mxu0 0.0
      %388 = vmatpush.msra.mxu0 0.0
      %389 = vmatpush.msra.mxu0 0.0
      %390 = vmatpush.msra.mxu0 0.0
      %391 = vmatpush.msra.mxu0 %v378
      %392 = vmatpush.msra.mxu0 %v337
      %393 = vmatpush.msra.mxu0 %v336
      %394 = vmatpush.msra.mxu0 %v335
      %395 = vmatpush.msra.mxu0 %v334
      %396 = vmatmul.bf16.gmra.mxu0 %v365
      %v397 = vpop.f32.mrf.mxu0
      %v398 = vadd.f32 %v341, %v397
      %v399 = vpop.f32.mrf.mxu0
      %v400 = vadd.f32 %v341, %v399
      %401 = vmatmul.bf16.gmra.mxu0 %v368
      %v402 = vpop.f32.mrf.mxu0
      %v403 = vadd.f32 %v341, %v402
      %v404 = vpop.f32.mrf.mxu0
      %v405 = vadd.f32 %v341, %v404
      %406 = vmatmul.bf16.gmra.mxu0 %v371
      %v407 = vpop.f32.mrf.mxu0
      %v408 = vadd.f32 %v341, %v407
      %v409 = vpop.f32.mrf.mxu0
      %v410 = vadd.f32 %v341, %v409
      %411 = vmatmul.bf16.gmra.mxu0 %v374
      %v412 = vpop.f32.mrf.mxu0
      %v413 = vadd.f32 %v341, %v412
      %v414 = vpop.f32.mrf.mxu0
      %v415 = vadd.f32 %v341, %v414
      %416 = vdwg.mxu0
      %v417 = vmax.f32 %v398, 0.0
      %v418 = vmax.f32 %v400, 0.0
      %v419 = vmax.f32 %v403, 0.0
      %v420 = vmax.f32 %v405, 0.0
      %v421 = vmax.f32 %v408, 0.0
      %v422 = vmax.f32 %v410, 0.0
      %v423 = vmax.f32 %v413, 0.0
      %v424 = vmax.f32 %v415, 0.0
      %vm425 = vcmask 64512
      %426 = vst.msk [vmem:[#allocation2] sm:$0xff] %vm425, 0.0
      %427 = vst.msk [vmem:[#allocation2 + $0x8] sm:$0xff] %vm425, 0.0
      %428 = vst.msk [vmem:[#allocation2 + $0x10] sm:$0xff] %vm425, 0.0
      %429 = vst.msk [vmem:[#allocation2 + $0x18] sm:$0xff] %vm425, 0.0
      %430 = vst.msk [vmem:[#allocation2 + $0x20] sm:$0xff] %vm425, 0.0
      %431 = vst.msk [vmem:[#allocation2 + $0x28] sm:$0xff] %vm425, 0.0
      %432 = vst.msk [vmem:[#allocation2 + $0x30] sm:$0xff] %vm425, 0.0
      %433 = vst.msk [vmem:[#allocation2 + $0x38] sm:$0xff] %vm425, 0.0
      %434 = vst.msk [vmem:[#allocation2 + $0x40] sm:$0xff] %vm425, 0.0
      %435 = vst.msk [vmem:[#allocation2 + $0x48] sm:$0xff] %vm425, 0.0
      %vm436 = vcmask 58368
      %437 = vst.msk [vmem:[#allocation2 + $0x50] sm:$0x3] %vm436, 0.0
      %438 = vst.msk [vmem:[#allocation2 + $0x9] sm:$0xff] %vm425, %v417
      %439 = vst.msk [vmem:[#allocation2 + $0x11] sm:$0xff] %vm425, %v418
      %440 = vst.msk [vmem:[#allocation2 + $0x19] sm:$0xff] %vm425, %v419
      %441 = vst.msk [vmem:[#allocation2 + $0x21] sm:$0xff] %vm425, %v420
      %442 = vst.msk [vmem:[#allocation2 + $0x29] sm:$0xff] %vm425, %v421
      %443 = vst.msk [vmem:[#allocation2 + $0x31] sm:$0xff] %vm425, %v422
      %444 = vst.msk [vmem:[#allocation2 + $0x39] sm:$0xff] %vm425, %v423
      %445 = vst.msk [vmem:[#allocation2 + $0x41] sm:$0xff] %vm425, %v424
      %v446 = vld [vmem:[%s320] sm:$0xf]
      %v447 = vld [vmem:[%s320 + $0x4] sm:$0xf]
      %v448 = vld [vmem:[%s320 + $0x8] sm:$0xf]
      %v449 = vld [vmem:[%s320 + $0xc] sm:$0xf]
      %v450 = vld [vmem:[%s320 + $0x10] sm:$0xf]
      %v451 = vld [vmem:[%s320 + $0x14] sm:$0xf]
      %v452 = vld [vmem:[%s320 + $0x18] sm:$0xf]
      %v453 = vld [vmem:[%s320 + $0x1c] sm:$0xf]
      %v454 = vld [vmem:[%s5] sm:$0xf]
      %v455 = vld [vmem:[%s6] sm:$0x1]
      %v457 = vperm.slane %v455, 0
      %v467 = vunpack.c.l.b16 %v446
      %v468 = vunpack.c.l.b16 %v447
      %v469 = vunpack.c.l.b16 %v448
      %v470 = vunpack.c.l.b16 %v449
      %v471 = vunpack.c.l.b16 %v450
      %v472 = vunpack.c.l.b16 %v451
      %v473 = vunpack.c.l.b16 %v452
      %v474 = vunpack.c.l.b16 %v453
      %v475 = vpack.c.b16 %v468, %v467
      %v476 = vpack.c.b16 %v470, %v469
      %v477 = vpack.c.b16 %v472, %v471
      %v478 = vpack.c.b16 %v474, %v473
      %vm479 = vcmask 31744
      %v481 = vsel %vm479, %v475, 0
      %v484 = vsel %vm479, %v476, 0
      %v487 = vsel %vm479, %v477, 0
      %v490 = vsel %vm479, %v478, 0
      %v493 = vsel %vm376, %v454, 0
      %495 = vmatpush.msra.mxu0 0.0
      %496 = vmatpush.msra.mxu0 0.0
      %497 = vmatpush.msra.mxu0 0.0
      %498 = vmatpush.msra.mxu0 0.0
      %499 = vmatpush.msra.mxu0 0.0
      %500 = vmatpush.msra.mxu0 0.0
      %501 = vmatpush.msra.mxu0 0.0
      %502 = vmatpush.msra.mxu0 0.0
      %503 = vmatpush.msra.mxu0 0.0
      %504 = vmatpush.msra.mxu0 0.0
      %505 = vmatpush.msra.mxu0 0.0
      %506 = vmatpush.msra.mxu0 0.0
      %507 = vmatpush.msra.mxu0 0.0
      %508 = vmatpush.msra.mxu0 0.0
      %509 = vmatpush.msra.mxu0 0.0
      %510 = vmatpush.msra.mxu0 %v493
      %511 = vmatmul.bf16.gmra.mxu0 %v481
      %v512 = vpop.f32.mrf.mxu0
      %v513 = vadd.f32 %v457, %v512
      %v514 = vpop.f32.mrf.mxu0
      %v515 = vadd.f32 %v457, %v514
      %516 = vmatmul.bf16.gmra.mxu0 %v484
      %v517 = vpop.f32.mrf.mxu0
      %v518 = vadd.f32 %v457, %v517
      %v519 = vpop.f32.mrf.mxu0
      %v520 = vadd.f32 %v457, %v519
      %521 = vmatmul.bf16.gmra.mxu0 %v487
      %v522 = vpop.f32.mrf.mxu0
      %v523 = vadd.f32 %v457, %v522
      %v524 = vpop.f32.mrf.mxu0
      %v525 = vadd.f32 %v457, %v524
      %526 = vmatmul.bf16.gmra.mxu0 %v490
      %v527 = vpop.f32.mrf.mxu0
      %v528 = vadd.f32 %v457, %v527
      %v529 = vpop.f32.mrf.mxu0
      %v530 = vadd.f32 %v457, %v529
      %531 = vdwg.mxu0
      %v532 = vld [vmem:[#allocation2] sm:$0xff]
      %v533 = vld [vmem:[#allocation2 + $0x8] sm:$0xff]
      %v534 = vld [vmem:[#allocation2 + $0x10] sm:$0xff]
      %v535 = vld [vmem:[#allocation2 + $0x18] sm:$0xff]
      %v536 = vld [vmem:[#allocation2 + $0x20] sm:$0xff]
      %v537 = vld [vmem:[#allocation2 + $0x28] sm:$0xff]
      %v538 = vld [vmem:[#allocation2 + $0x30] sm:$0xff]
      %v539 = vld [vmem:[#allocation2 + $0x38] sm:$0xff]
      %v540 = vld [vmem:[%s7] sm:$0xff]
      %v541 = vld [vmem:[%s7 + $0x8] sm:$0xff]
      %v542 = vld [vmem:[%s7 + $0x10] sm:$0xff]
      %v543 = vld [vmem:[%s7 + $0x18] sm:$0xff]
      %v544 = vld [vmem:[%s7 + $0x20] sm:$0xff]
      %v545 = vld [vmem:[%s7 + $0x28] sm:$0xff]
      %v546 = vld [vmem:[%s7 + $0x30] sm:$0xff]
      %v547 = vld [vmem:[%s7 + $0x38] sm:$0xff]
      %549 = vset.pattern.permute.xlu0 0
      %550 = vperm.xlu0 %549, %v540
      %v551 = vpop.permute.xlu0 %550
      %554 = vset.pattern.permute.xlu0 0
      %555 = vperm.xlu0 %554, %v541
      %v556 = vpop.permute.xlu0 %555
      %559 = vset.pattern.permute.xlu0 0
      %560 = vperm.xlu0 %559, %v542
      %v561 = vpop.permute.xlu0 %560
      %564 = vset.pattern.permute.xlu0 0
      %565 = vperm.xlu0 %564, %v543
      %v566 = vpop.permute.xlu0 %565
      %569 = vset.pattern.permute.xlu0 0
      %570 = vperm.xlu0 %569, %v544
      %v571 = vpop.permute.xlu0 %570
      %574 = vset.pattern.permute.xlu0 0
      %575 = vperm.xlu0 %574, %v545
      %v576 = vpop.permute.xlu0 %575
      %579 = vset.pattern.permute.xlu0 0
      %580 = vperm.xlu0 %579, %v546
      %v581 = vpop.permute.xlu0 %580
      %584 = vset.pattern.permute.xlu0 0
      %585 = vperm.xlu0 %584, %v547
      %v586 = vpop.permute.xlu0 %585
      %v588 = vmul.f32 %v532, %v551
      %v589 = vmul.f32 %v533, %v556
      %v590 = vmul.f32 %v534, %v561
      %v591 = vmul.f32 %v535, %v566
      %v592 = vmul.f32 %v536, %v571
      %v593 = vmul.f32 %v537, %v576
      %v594 = vmul.f32 %v538, %v581
      %v595 = vmul.f32 %v539, %v586
      %v596 = vld [vmem:[%s4] sm:$0xff]
      %v598 = vsel %vm425, %v588, 0
      %v601 = vsel %vm425, %v589, 0
      %v604 = vsel %vm425, %v590, 0
      %v607 = vsel %vm425, %v591, 0
      %v610 = vsel %vm425, %v592, 0
      %v613 = vsel %vm425, %v593, 0
      %v616 = vsel %vm425, %v594, 0
      %v619 = vsel %vm425, %v595, 0
      %621 = vmatpush.msra.mxu0 0.0
      %622 = vmatpush.msra.mxu0 0.0
      %623 = vmatpush.msra.mxu0 0.0
      %624 = vmatpush.msra.mxu0 0.0
      %625 = vmatpush.msra.mxu0 0.0
      %626 = vmatpush.msra.mxu0 0.0
      %627 = vmatpush.msra.mxu0 0.0
      %628 = vmatpush.msra.mxu0 0.0
      %629 = vmatpush.msra.mxu0 0.0
      %630 = vmatpush.msra.mxu0 0.0
      %631 = vmatpush.msra.mxu0 0.0
      %632 = vmatpush.msra.mxu0 0.0
      %633 = vmatpush.msra.mxu0 0.0
      %634 = vmatpush.msra.mxu0 0.0
      %635 = vmatpush.msra.mxu0 0.0
      %636 = vmatpush.msra.mxu0 %v596
      %637 = vmatmul.f32.gmra.mxu0 %v598
      %v638 = vpop.f32.mrf.mxu0
      %v639 = vadd.f32 0.0, %v638
      %640 = vmatmul.f32.gmra.mxu0 %v601
      %v641 = vpop.f32.mrf.mxu0
      %v642 = vadd.f32 0.0, %v641
      %643 = vmatmul.f32.gmra.mxu0 %v604
      %v644 = vpop.f32.mrf.mxu0
      %v645 = vadd.f32 0.0, %v644
      %646 = vmatmul.f32.gmra.mxu0 %v607
      %v647 = vpop.f32.mrf.mxu0
      %v648 = vadd.f32 0.0, %v647
      %649 = vmatmul.f32.gmra.mxu0 %v610
      %v650 = vpop.f32.mrf.mxu0
      %v651 = vadd.f32 0.0, %v650
      %652 = vmatmul.f32.gmra.mxu0 %v613
      %v653 = vpop.f32.mrf.mxu0
      %v654 = vadd.f32 0.0, %v653
      %655 = vmatmul.f32.gmra.mxu0 %v616
      %v656 = vpop.f32.mrf.mxu0
      %v657 = vadd.f32 0.0, %v656
      %658 = vmatmul.f32.gmra.mxu0 %v619
      %v659 = vpop.f32.mrf.mxu0
      %v660 = vadd.f32 0.0, %v659
      %661 = vdwg.mxu0
      %v662 = vadd.f32 %v513, %v639
      %v663 = vadd.f32 %v515, %v642
      %v664 = vadd.f32 %v518, %v645
      %v665 = vadd.f32 %v520, %v648
      %v666 = vadd.f32 %v523, %v651
      %v667 = vadd.f32 %v525, %v654
      %v668 = vadd.f32 %v528, %v657
      %v669 = vadd.f32 %v530, %v660
      %v670 = vld [vmem:[#allocation2 + $0x1] sm:$0xff]
      %v671 = vld [vmem:[#allocation2 + $0x9] sm:$0xff]
      %v672 = vld [vmem:[#allocation2 + $0x11] sm:$0xff]
      %v673 = vld [vmem:[#allocation2 + $0x19] sm:$0xff]
      %v674 = vld [vmem:[#allocation2 + $0x21] sm:$0xff]
      %v675 = vld [vmem:[#allocation2 + $0x29] sm:$0xff]
      %v676 = vld [vmem:[#allocation2 + $0x31] sm:$0xff]
      %v677 = vld [vmem:[#allocation2 + $0x39] sm:$0xff]
      %s678 = scalar_lea.vmem %s7, 64
      %v679 = vld [vmem:[%s678] sm:$0xff]
      %v680 = vld [vmem:[%s678 + $0x8] sm:$0xff]
      %v681 = vld [vmem:[%s678 + $0x10] sm:$0xff]
      %v682 = vld [vmem:[%s678 + $0x18] sm:$0xff]
      %v683 = vld [vmem:[%s678 + $0x20] sm:$0xff]
      %v684 = vld [vmem:[%s678 + $0x28] sm:$0xff]
      %v685 = vld [vmem:[%s678 + $0x30] sm:$0xff]
      %v686 = vld [vmem:[%s678 + $0x38] sm:$0xff]
      %688 = vset.pattern.permute.xlu0 0
      %689 = vperm.xlu0 %688, %v679
      %v690 = vpop.permute.xlu0 %689
      %693 = vset.pattern.permute.xlu0 0
      %694 = vperm.xlu0 %693, %v680
      %v695 = vpop.permute.xlu0 %694
      %698 = vset.pattern.permute.xlu0 0
      %699 = vperm.xlu0 %698, %v681
      %v700 = vpop.permute.xlu0 %699
      %703 = vset.pattern.permute.xlu0 0
      %704 = vperm.xlu0 %703, %v682
      %v705 = vpop.permute.xlu0 %704
      %708 = vset.pattern.permute.xlu0 0
      %709 = vperm.xlu0 %708, %v683
      %v710 = vpop.permute.xlu0 %709
      %713 = vset.pattern.permute.xlu0 0
      %714 = vperm.xlu0 %713, %v684
      %v715 = vpop.permute.xlu0 %714
      %718 = vset.pattern.permute.xlu0 0
      %719 = vperm.xlu0 %718, %v685
      %v720 = vpop.permute.xlu0 %719
      %723 = vset.pattern.permute.xlu0 0
      %724 = vperm.xlu0 %723, %v686
      %v725 = vpop.permute.xlu0 %724
      %v727 = vmul.f32 %v670, %v690
      %v728 = vmul.f32 %v671, %v695
      %v729 = vmul.f32 %v672, %v700
      %v730 = vmul.f32 %v673, %v705
      %v731 = vmul.f32 %v674, %v710
      %v732 = vmul.f32 %v675, %v715
      %v733 = vmul.f32 %v676, %v720
      %v734 = vmul.f32 %v677, %v725
      %v735 = vld [vmem:[%s4 + $0x8] sm:$0xff]
      %v737 = vsel %vm425, %v727, 0
      %v740 = vsel %vm425, %v728, 0
      %v743 = vsel %vm425, %v729, 0
      %v746 = vsel %vm425, %v730, 0
      %v749 = vsel %vm425, %v731, 0
      %v752 = vsel %vm425, %v732, 0
      %v755 = vsel %vm425, %v733, 0
      %v758 = vsel %vm425, %v734, 0
      %760 = vmatpush.msra.mxu0 0.0
      %761 = vmatpush.msra.mxu0 0.0
      %762 = vmatpush.msra.mxu0 0.0
      %763 = vmatpush.msra.mxu0 0.0
      %764 = vmatpush.msra.mxu0 0.0
      %765 = vmatpush.msra.mxu0 0.0
      %766 = vmatpush.msra.mxu0 0.0
      %767 = vmatpush.msra.mxu0 0.0
      %768 = vmatpush.msra.mxu0 0.0
      %769 = vmatpush.msra.mxu0 0.0
      %770 = vmatpush.msra.mxu0 0.0
      %771 = vmatpush.msra.mxu0 0.0
      %772 = vmatpush.msra.mxu0 0.0
      %773 = vmatpush.msra.mxu0 0.0
      %774 = vmatpush.msra.mxu0 0.0
      %775 = vmatpush.msra.mxu0 %v735
      %776 = vmatmul.f32.gmra.mxu0 %v737
      %v777 = vpop.f32.mrf.mxu0
      %v778 = vadd.f32 0.0, %v777
      %779 = vmatmul.f32.gmra.mxu0 %v740
      %v780 = vpop.f32.mrf.mxu0
      %v781 = vadd.f32 0.0, %v780
      %782 = vmatmul.f32.gmra.mxu0 %v743
      %v783 = vpop.f32.mrf.mxu0
      %v784 = vadd.f32 0.0, %v783
      %785 = vmatmul.f32.gmra.mxu0 %v746
      %v786 = vpop.f32.mrf.mxu0
      %v787 = vadd.f32 0.0, %v786
      %788 = vmatmul.f32.gmra.mxu0 %v749
      %v789 = vpop.f32.mrf.mxu0
      %v790 = vadd.f32 0.0, %v789
      %791 = vmatmul.f32.gmra.mxu0 %v752
      %v792 = vpop.f32.mrf.mxu0
      %v793 = vadd.f32 0.0, %v792
      %794 = vmatmul.f32.gmra.mxu0 %v755
      %v795 = vpop.f32.mrf.mxu0
      %v796 = vadd.f32 0.0, %v795
      %797 = vmatmul.f32.gmra.mxu0 %v758
      %v798 = vpop.f32.mrf.mxu0
      %v799 = vadd.f32 0.0, %v798
      %800 = vdwg.mxu0
      %v801 = vadd.f32 %v662, %v778
      %v802 = vadd.f32 %v663, %v781
      %v803 = vadd.f32 %v664, %v784
      %v804 = vadd.f32 %v665, %v787
      %v805 = vadd.f32 %v666, %v790
      %v806 = vadd.f32 %v667, %v793
      %v807 = vadd.f32 %v668, %v796
      %v808 = vadd.f32 %v669, %v799
      %v809 = vld [vmem:[#allocation2 + $0x2] sm:$0xff]
      %v810 = vld [vmem:[#allocation2 + $0xa] sm:$0xff]
      %v811 = vld [vmem:[#allocation2 + $0x12] sm:$0xff]
      %v812 = vld [vmem:[#allocation2 + $0x1a] sm:$0xff]
      %v813 = vld [vmem:[#allocation2 + $0x22] sm:$0xff]
      %v814 = vld [vmem:[#allocation2 + $0x2a] sm:$0xff]
      %v815 = vld [vmem:[#allocation2 + $0x32] sm:$0xff]
      %v816 = vld [vmem:[#allocation2 + $0x3a] sm:$0xff]
      %s817 = scalar_lea.vmem %s7, 128
      %v818 = vld [vmem:[%s817] sm:$0xff]
      %v819 = vld [vmem:[%s817 + $0x8] sm:$0xff]
      %v820 = vld [vmem:[%s817 + $0x10] sm:$0xff]
      %v821 = vld [vmem:[%s817 + $0x18] sm:$0xff]
      %v822 = vld [vmem:[%s817 + $0x20] sm:$0xff]
      %v823 = vld [vmem:[%s817 + $0x28] sm:$0xff]
      %v824 = vld [vmem:[%s817 + $0x30] sm:$0xff]
      %v825 = vld [vmem:[%s817 + $0x38] sm:$0xff]
      %827 = vset.pattern.permute.xlu0 0
      %828 = vperm.xlu0 %827, %v818
      %v829 = vpop.permute.xlu0 %828
      %832 = vset.pattern.permute.xlu0 0
      %833 = vperm.xlu0 %832, %v819
      %v834 = vpop.permute.xlu0 %833
      %837 = vset.pattern.permute.xlu0 0
      %838 = vperm.xlu0 %837, %v820
      %v839 = vpop.permute.xlu0 %838
      %842 = vset.pattern.permute.xlu0 0
      %843 = vperm.xlu0 %842, %v821
      %v844 = vpop.permute.xlu0 %843
      %847 = vset.pattern.permute.xlu0 0
      %848 = vperm.xlu0 %847, %v822
      %v849 = vpop.permute.xlu0 %848
      %852 = vset.pattern.permute.xlu0 0
      %853 = vperm.xlu0 %852, %v823
      %v854 = vpop.permute.xlu0 %853
      %857 = vset.pattern.permute.xlu0 0
      %858 = vperm.xlu0 %857, %v824
      %v859 = vpop.permute.xlu0 %858
      %862 = vset.pattern.permute.xlu0 0
      %863 = vperm.xlu0 %862, %v825
      %v864 = vpop.permute.xlu0 %863
      %v866 = vmul.f32 %v809, %v829
      %v867 = vmul.f32 %v810, %v834
      %v868 = vmul.f32 %v811, %v839
      %v869 = vmul.f32 %v812, %v844
      %v870 = vmul.f32 %v813, %v849
      %v871 = vmul.f32 %v814, %v854
      %v872 = vmul.f32 %v815, %v859
      %v873 = vmul.f32 %v816, %v864
      %v874 = vld [vmem:[%s4 + $0x10] sm:$0xff]
      %v876 = vsel %vm425, %v866, 0
      %v879 = vsel %vm425, %v867, 0
      %v882 = vsel %vm425, %v868, 0
      %v885 = vsel %vm425, %v869, 0
      %v888 = vsel %vm425, %v870, 0
      %v891 = vsel %vm425, %v871, 0
      %v894 = vsel %vm425, %v872, 0
      %v897 = vsel %vm425, %v873, 0
      %899 = vmatpush.msra.mxu0 0.0
      %900 = vmatpush.msra.mxu0 0.0
      %901 = vmatpush.msra.mxu0 0.0
      %902 = vmatpush.msra.mxu0 0.0
      %903 = vmatpush.msra.mxu0 0.0
      %904 = vmatpush.msra.mxu0 0.0
      %905 = vmatpush.msra.mxu0 0.0
      %906 = vmatpush.msra.mxu0 0.0
      %907 = vmatpush.msra.mxu0 0.0
      %908 = vmatpush.msra.mxu0 0.0
      %909 = vmatpush.msra.mxu0 0.0
      %910 = vmatpush.msra.mxu0 0.0
      %911 = vmatpush.msra.mxu0 0.0
      %912 = vmatpush.msra.mxu0 0.0
      %913 = vmatpush.msra.mxu0 0.0
      %914 = vmatpush.msra.mxu0 %v874
      %915 = vmatmul.f32.gmra.mxu0 %v876
      %v916 = vpop.f32.mrf.mxu0
      %v917 = vadd.f32 0.0, %v916
      %918 = vmatmul.f32.gmra.mxu0 %v879
      %v919 = vpop.f32.mrf.mxu0
      %v920 = vadd.f32 0.0, %v919
      %921 = vmatmul.f32.gmra.mxu0 %v882
      %v922 = vpop.f32.mrf.mxu0
      %v923 = vadd.f32 0.0, %v922
      %924 = vmatmul.f32.gmra.mxu0 %v885
      %v925 = vpop.f32.mrf.mxu0
      %v926 = vadd.f32 0.0, %v925
      %927 = vmatmul.f32.gmra.mxu0 %v888
      %v928 = vpop.f32.mrf.mxu0
      %v929 = vadd.f32 0.0, %v928
      %930 = vmatmul.f32.gmra.mxu0 %v891
      %v931 = vpop.f32.mrf.mxu0
      %v932 = vadd.f32 0.0, %v931
      %933 = vmatmul.f32.gmra.mxu0 %v894
      %v934 = vpop.f32.mrf.mxu0
      %v935 = vadd.f32 0.0, %v934
      %936 = vmatmul.f32.gmra.mxu0 %v897
      %v937 = vpop.f32.mrf.mxu0
      %v938 = vadd.f32 0.0, %v937
      %939 = vdwg.mxu0
      %v940 = vadd.f32 %v801, %v917
      %v941 = vadd.f32 %v802, %v920
      %v942 = vadd.f32 %v803, %v923
      %v943 = vadd.f32 %v804, %v926
      %v944 = vadd.f32 %v805, %v929
      %v945 = vadd.f32 %v806, %v932
      %v946 = vadd.f32 %v807, %v935
      %v947 = vadd.f32 %v808, %v938
      %v948 = vld [vmem:[#allocation2 + $0x8] sm:$0xff]
      %v949 = vld [vmem:[#allocation2 + $0x10] sm:$0xff]
      %v950 = vld [vmem:[#allocation2 + $0x18] sm:$0xff]
      %v951 = vld [vmem:[#allocation2 + $0x20] sm:$0xff]
      %v952 = vld [vmem:[#allocation2 + $0x28] sm:$0xff]
      %v953 = vld [vmem:[#allocation2 + $0x30] sm:$0xff]
      %v954 = vld [vmem:[#allocation2 + $0x38] sm:$0xff]
      %v955 = vld [vmem:[#allocation2 + $0x40] sm:$0xff]
      %s956 = scalar_lea.vmem %s7, 192
      %v957 = vld [vmem:[%s956] sm:$0xff]
      %v958 = vld [vmem:[%s956 + $0x8] sm:$0xff]
      %v959 = vld [vmem:[%s956 + $0x10] sm:$0xff]
      %v960 = vld [vmem:[%s956 + $0x18] sm:$0xff]
      %v961 = vld [vmem:[%s956 + $0x20] sm:$0xff]
      %v962 = vld [vmem:[%s956 + $0x28] sm:$0xff]
      %v963 = vld [vmem:[%s956 + $0x30] sm:$0xff]
      %v964 = vld [vmem:[%s956 + $0x38] sm:$0xff]
      %966 = vset.pattern.permute.xlu0 0
      %967 = vperm.xlu0 %966, %v957
      %v968 = vpop.permute.xlu0 %967
      %971 = vset.pattern.permute.xlu0 0
      %972 = vperm.xlu0 %971, %v958
      %v973 = vpop.permute.xlu0 %972
      %976 = vset.pattern.permute.xlu0 0
      %977 = vperm.xlu0 %976, %v959
      %v978 = vpop.permute.xlu0 %977
      %981 = vset.pattern.permute.xlu0 0
      %982 = vperm.xlu0 %981, %v960
      %v983 = vpop.permute.xlu0 %982
      %986 = vset.pattern.permute.xlu0 0
      %987 = vperm.xlu0 %986, %v961
      %v988 = vpop.permute.xlu0 %987
      %991 = vset.pattern.permute.xlu0 0
      %992 = vperm.xlu0 %991, %v962
      %v993 = vpop.permute.xlu0 %992
      %996 = vset.pattern.permute.xlu0 0
      %997 = vperm.xlu0 %996, %v963
      %v998 = vpop.permute.xlu0 %997
      %1001 = vset.pattern.permute.xlu0 0
      %1002 = vperm.xlu0 %1001, %v964
      %v1003 = vpop.permute.xlu0 %1002
      %v1005 = vmul.f32 %v948, %v968
      %v1006 = vmul.f32 %v949, %v973
      %v1007 = vmul.f32 %v950, %v978
      %v1008 = vmul.f32 %v951, %v983
      %v1009 = vmul.f32 %v952, %v988
      %v1010 = vmul.f32 %v953, %v993
      %v1011 = vmul.f32 %v954, %v998
      %v1012 = vmul.f32 %v955, %v1003
      %v1013 = vld [vmem:[%s4 + $0x18] sm:$0xff]
      %v1015 = vsel %vm425, %v1005, 0
      %v1018 = vsel %vm425, %v1006, 0
      %v1021 = vsel %vm425, %v1007, 0
      %v1024 = vsel %vm425, %v1008, 0
      %v1027 = vsel %vm425, %v1009, 0
      %v1030 = vsel %vm425, %v1010, 0
      %v1033 = vsel %vm425, %v1011, 0
      %v1036 = vsel %vm425, %v1012, 0
      %1038 = vmatpush.msra.mxu0 0.0
      %1039 = vmatpush.msra.mxu0 0.0
      %1040 = vmatpush.msra.mxu0 0.0
      %1041 = vmatpush.msra.mxu0 0.0
      %1042 = vmatpush.msra.mxu0 0.0
      %1043 = vmatpush.msra.mxu0 0.0
      %1044 = vmatpush.msra.mxu0 0.0
      %1045 = vmatpush.msra.mxu0 0.0
      %1046 = vmatpush.msra.mxu0 0.0
      %1047 = vmatpush.msra.mxu0 0.0
      %1048 = vmatpush.msra.mxu0 0.0
      %1049 = vmatpush.msra.mxu0 0.0
      %1050 = vmatpush.msra.mxu0 0.0
      %1051 = vmatpush.msra.mxu0 0.0
      %1052 = vmatpush.msra.mxu0 0.0
      %1053 = vmatpush.msra.mxu0 %v1013
      %1054 = vmatmul.f32.gmra.mxu0 %v1015
      %v1055 = vpop.f32.mrf.mxu0
      %v1056 = vadd.f32 0.0, %v1055
      %1057 = vmatmul.f32.gmra.mxu0 %v1018
      %v1058 = vpop.f32.mrf.mxu0
      %v1059 = vadd.f32 0.0, %v1058
      %1060 = vmatmul.f32.gmra.mxu0 %v1021
      %v1061 = vpop.f32.mrf.mxu0
      %v1062 = vadd.f32 0.0, %v1061
      %1063 = vmatmul.f32.gmra.mxu0 %v1024
      %v1064 = vpop.f32.mrf.mxu0
      %v1065 = vadd.f32 0.0, %v1064
      %1066 = vmatmul.f32.gmra.mxu0 %v1027
      %v1067 = vpop.f32.mrf.mxu0
      %v1068 = vadd.f32 0.0, %v1067
      %1069 = vmatmul.f32.gmra.mxu0 %v1030
      %v1070 = vpop.f32.mrf.mxu0
      %v1071 = vadd.f32 0.0, %v1070
      %1072 = vmatmul.f32.gmra.mxu0 %v1033
      %v1073 = vpop.f32.mrf.mxu0
      %v1074 = vadd.f32 0.0, %v1073
      %1075 = vmatmul.f32.gmra.mxu0 %v1036
      %v1076 = vpop.f32.mrf.mxu0
      %v1077 = vadd.f32 0.0, %v1076
      %1078 = vdwg.mxu0
      %v1079 = vadd.f32 %v940, %v1056
      %v1080 = vadd.f32 %v941, %v1059
      %v1081 = vadd.f32 %v942, %v1062
      %v1082 = vadd.f32 %v943, %v1065
      %v1083 = vadd.f32 %v944, %v1068
      %v1084 = vadd.f32 %v945, %v1071
      %v1085 = vadd.f32 %v946, %v1074
      %v1086 = vadd.f32 %v947, %v1077
      %v1087 = vld [vmem:[#allocation2 + $0x9] sm:$0xff]
      %v1088 = vld [vmem:[#allocation2 + $0x11] sm:$0xff]
      %v1089 = vld [vmem:[#allocation2 + $0x19] sm:$0xff]
      %v1090 = vld [vmem:[#allocation2 + $0x21] sm:$0xff]
      %v1091 = vld [vmem:[#allocation2 + $0x29] sm:$0xff]
      %v1092 = vld [vmem:[#allocation2 + $0x31] sm:$0xff]
      %v1093 = vld [vmem:[#allocation2 + $0x39] sm:$0xff]
      %v1094 = vld [vmem:[#allocation2 + $0x41] sm:$0xff]
      %s1095 = scalar_lea.vmem %s7, 256
      %v1096 = vld [vmem:[%s1095] sm:$0xff]
      %v1097 = vld [vmem:[%s1095 + $0x8] sm:$0xff]
      %v1098 = vld [vmem:[%s1095 + $0x10] sm:$0xff]
      %v1099 = vld [vmem:[%s1095 + $0x18] sm:$0xff]
      %v1100 = vld [vmem:[%s1095 + $0x20] sm:$0xff]
      %v1101 = vld [vmem:[%s1095 + $0x28] sm:$0xff]
      %v1102 = vld [vmem:[%s1095 + $0x30] sm:$0xff]
      %v1103 = vld [vmem:[%s1095 + $0x38] sm:$0xff]
      %1105 = vset.pattern.permute.xlu0 0
      %1106 = vperm.xlu0 %1105, %v1096
      %v1107 = vpop.permute.xlu0 %1106
      %1110 = vset.pattern.permute.xlu0 0
      %1111 = vperm.xlu0 %1110, %v1097
      %v1112 = vpop.permute.xlu0 %1111
      %1115 = vset.pattern.permute.xlu0 0
      %1116 = vperm.xlu0 %1115, %v1098
      %v1117 = vpop.permute.xlu0 %1116
      %1120 = vset.pattern.permute.xlu0 0
      %1121 = vperm.xlu0 %1120, %v1099
      %v1122 = vpop.permute.xlu0 %1121
      %1125 = vset.pattern.permute.xlu0 0
      %1126 = vperm.xlu0 %1125, %v1100
      %v1127 = vpop.permute.xlu0 %1126
      %1130 = vset.pattern.permute.xlu0 0
      %1131 = vperm.xlu0 %1130, %v1101
      %v1132 = vpop.permute.xlu0 %1131
      %1135 = vset.pattern.permute.xlu0 0
      %1136 = vperm.xlu0 %1135, %v1102
      %v1137 = vpop.permute.xlu0 %1136
      %1140 = vset.pattern.permute.xlu0 0
      %1141 = vperm.xlu0 %1140, %v1103
      %v1142 = vpop.permute.xlu0 %1141
      %v1144 = vmul.f32 %v1087, %v1107
      %v1145 = vmul.f32 %v1088, %v1112
      %v1146 = vmul.f32 %v1089, %v1117
      %v1147 = vmul.f32 %v1090, %v1122
      %v1148 = vmul.f32 %v1091, %v1127
      %v1149 = vmul.f32 %v1092, %v1132
      %v1150 = vmul.f32 %v1093, %v1137
      %v1151 = vmul.f32 %v1094, %v1142
      %v1152 = vld [vmem:[%s4 + $0x20] sm:$0xff]
      %v1154 = vsel %vm425, %v1144, 0
      %v1157 = vsel %vm425, %v1145, 0
      %v1160 = vsel %vm425, %v1146, 0
      %v1163 = vsel %vm425, %v1147, 0
      %v1166 = vsel %vm425, %v1148, 0
      %v1169 = vsel %vm425, %v1149, 0
      %v1172 = vsel %vm425, %v1150, 0
      %v1175 = vsel %vm425, %v1151, 0
      %1177 = vmatpush.msra.mxu0 0.0
      %1178 = vmatpush.msra.mxu0 0.0
      %1179 = vmatpush.msra.mxu0 0.0
      %1180 = vmatpush.msra.mxu0 0.0
      %1181 = vmatpush.msra.mxu0 0.0
      %1182 = vmatpush.msra.mxu0 0.0
      %1183 = vmatpush.msra.mxu0 0.0
      %1184 = vmatpush.msra.mxu0 0.0
      %1185 = vmatpush.msra.mxu0 0.0
      %1186 = vmatpush.msra.mxu0 0.0
      %1187 = vmatpush.msra.mxu0 0.0
      %1188 = vmatpush.msra.mxu0 0.0
      %1189 = vmatpush.msra.mxu0 0.0
      %1190 = vmatpush.msra.mxu0 0.0
      %1191 = vmatpush.msra.mxu0 0.0
      %1192 = vmatpush.msra.mxu0 %v1152
      %1193 = vmatmul.f32.gmra.mxu0 %v1154
      %v1194 = vpop.f32.mrf.mxu0
      %v1195 = vadd.f32 0.0, %v1194
      %1196 = vmatmul.f32.gmra.mxu0 %v1157
      %v1197 = vpop.f32.mrf.mxu0
      %v1198 = vadd.f32 0.0, %v1197
      %1199 = vmatmul.f32.gmra.mxu0 %v1160
      %v1200 = vpop.f32.mrf.mxu0
      %v1201 = vadd.f32 0.0, %v1200
      %1202 = vmatmul.f32.gmra.mxu0 %v1163
      %v1203 = vpop.f32.mrf.mxu0
      %v1204 = vadd.f32 0.0, %v1203
      %1205 = vmatmul.f32.gmra.mxu0 %v1166
      %v1206 = vpop.f32.mrf.mxu0
      %v1207 = vadd.f32 0.0, %v1206
      %1208 = vmatmul.f32.gmra.mxu0 %v1169
      %v1209 = vpop.f32.mrf.mxu0
      %v1210 = vadd.f32 0.0, %v1209
      %1211 = vmatmul.f32.gmra.mxu0 %v1172
      %v1212 = vpop.f32.mrf.mxu0
      %v1213 = vadd.f32 0.0, %v1212
      %1214 = vmatmul.f32.gmra.mxu0 %v1175
      %v1215 = vpop.f32.mrf.mxu0
      %v1216 = vadd.f32 0.0, %v1215
      %1217 = vdwg.mxu0
      %v1218 = vadd.f32 %v1079, %v1195
      %v1219 = vadd.f32 %v1080, %v1198
      %v1220 = vadd.f32 %v1081, %v1201
      %v1221 = vadd.f32 %v1082, %v1204
      %v1222 = vadd.f32 %v1083, %v1207
      %v1223 = vadd.f32 %v1084, %v1210
      %v1224 = vadd.f32 %v1085, %v1213
      %v1225 = vadd.f32 %v1086, %v1216
      %v1226 = vld [vmem:[#allocation2 + $0xa] sm:$0xff]
      %v1227 = vld [vmem:[#allocation2 + $0x12] sm:$0xff]
      %v1228 = vld [vmem:[#allocation2 + $0x1a] sm:$0xff]
      %v1229 = vld [vmem:[#allocation2 + $0x22] sm:$0xff]
      %v1230 = vld [vmem:[#allocation2 + $0x2a] sm:$0xff]
      %v1231 = vld [vmem:[#allocation2 + $0x32] sm:$0xff]
      %v1232 = vld [vmem:[#allocation2 + $0x3a] sm:$0xff]
      %v1233 = vld [vmem:[#allocation2 + $0x42] sm:$0xff]
      %s1234 = scalar_lea.vmem %s7, 320
      %v1235 = vld [vmem:[%s1234] sm:$0xff]
      %v1236 = vld [vmem:[%s1234 + $0x8] sm:$0xff]
      %v1237 = vld [vmem:[%s1234 + $0x10] sm:$0xff]
      %v1238 = vld [vmem:[%s1234 + $0x18] sm:$0xff]
      %v1239 = vld [vmem:[%s1234 + $0x20] sm:$0xff]
      %v1240 = vld [vmem:[%s1234 + $0x28] sm:$0xff]
      %v1241 = vld [vmem:[%s1234 + $0x30] sm:$0xff]
      %v1242 = vld [vmem:[%s1234 + $0x38] sm:$0xff]
      %1244 = vset.pattern.permute.xlu0 0
      %1245 = vperm.xlu0 %1244, %v1235
      %v1246 = vpop.permute.xlu0 %1245
      %1249 = vset.pattern.permute.xlu0 0
      %1250 = vperm.xlu0 %1249, %v1236
      %v1251 = vpop.permute.xlu0 %1250
      %1254 = vset.pattern.permute.xlu0 0
      %1255 = vperm.xlu0 %1254, %v1237
      %v1256 = vpop.permute.xlu0 %1255
      %1259 = vset.pattern.permute.xlu0 0
      %1260 = vperm.xlu0 %1259, %v1238
      %v1261 = vpop.permute.xlu0 %1260
      %1264 = vset.pattern.permute.xlu0 0
      %1265 = vperm.xlu0 %1264, %v1239
      %v1266 = vpop.permute.xlu0 %1265
      %1269 = vset.pattern.permute.xlu0 0
      %1270 = vperm.xlu0 %1269, %v1240
      %v1271 = vpop.permute.xlu0 %1270
      %1274 = vset.pattern.permute.xlu0 0
      %1275 = vperm.xlu0 %1274, %v1241
      %v1276 = vpop.permute.xlu0 %1275
      %1279 = vset.pattern.permute.xlu0 0
      %1280 = vperm.xlu0 %1279, %v1242
      %v1281 = vpop.permute.xlu0 %1280
      %v1283 = vmul.f32 %v1226, %v1246
      %v1284 = vmul.f32 %v1227, %v1251
      %v1285 = vmul.f32 %v1228, %v1256
      %v1286 = vmul.f32 %v1229, %v1261
      %v1287 = vmul.f32 %v1230, %v1266
      %v1288 = vmul.f32 %v1231, %v1271
      %v1289 = vmul.f32 %v1232, %v1276
      %v1290 = vmul.f32 %v1233, %v1281
      %v1291 = vld [vmem:[%s4 + $0x28] sm:$0xff]
      %v1293 = vsel %vm425, %v1283, 0
      %v1296 = vsel %vm425, %v1284, 0
      %v1299 = vsel %vm425, %v1285, 0
      %v1302 = vsel %vm425, %v1286, 0
      %v1305 = vsel %vm425, %v1287, 0
      %v1308 = vsel %vm425, %v1288, 0
      %v1311 = vsel %vm425, %v1289, 0
      %v1314 = vsel %vm425, %v1290, 0
      %1316 = vmatpush.msra.mxu0 0.0
      %1317 = vmatpush.msra.mxu0 0.0
      %1318 = vmatpush.msra.mxu0 0.0
      %1319 = vmatpush.msra.mxu0 0.0
      %1320 = vmatpush.msra.mxu0 0.0
      %1321 = vmatpush.msra.mxu0 0.0
      %1322 = vmatpush.msra.mxu0 0.0
      %1323 = vmatpush.msra.mxu0 0.0
      %1324 = vmatpush.msra.mxu0 0.0
      %1325 = vmatpush.msra.mxu0 0.0
      %1326 = vmatpush.msra.mxu0 0.0
      %1327 = vmatpush.msra.mxu0 0.0
      %1328 = vmatpush.msra.mxu0 0.0
      %1329 = vmatpush.msra.mxu0 0.0
      %1330 = vmatpush.msra.mxu0 0.0
      %1331 = vmatpush.msra.mxu0 %v1291
      %1332 = vmatmul.f32.gmra.mxu0 %v1293
      %v1333 = vpop.f32.mrf.mxu0
      %v1334 = vadd.f32 0.0, %v1333
      %1335 = vmatmul.f32.gmra.mxu0 %v1296
      %v1336 = vpop.f32.mrf.mxu0
      %v1337 = vadd.f32 0.0, %v1336
      %1338 = vmatmul.f32.gmra.mxu0 %v1299
      %v1339 = vpop.f32.mrf.mxu0
      %v1340 = vadd.f32 0.0, %v1339
      %1341 = vmatmul.f32.gmra.mxu0 %v1302
      %v1342 = vpop.f32.mrf.mxu0
      %v1343 = vadd.f32 0.0, %v1342
      %1344 = vmatmul.f32.gmra.mxu0 %v1305
      %v1345 = vpop.f32.mrf.mxu0
      %v1346 = vadd.f32 0.0, %v1345
      %1347 = vmatmul.f32.gmra.mxu0 %v1308
      %v1348 = vpop.f32.mrf.mxu0
      %v1349 = vadd.f32 0.0, %v1348
      %1350 = vmatmul.f32.gmra.mxu0 %v1311
      %v1351 = vpop.f32.mrf.mxu0
      %v1352 = vadd.f32 0.0, %v1351
      %1353 = vmatmul.f32.gmra.mxu0 %v1314
      %v1354 = vpop.f32.mrf.mxu0
      %v1355 = vadd.f32 0.0, %v1354
      %1356 = vdwg.mxu0
      %v1357 = vadd.f32 %v1218, %v1334
      %v1358 = vadd.f32 %v1219, %v1337
      %v1359 = vadd.f32 %v1220, %v1340
      %v1360 = vadd.f32 %v1221, %v1343
      %v1361 = vadd.f32 %v1222, %v1346
      %v1362 = vadd.f32 %v1223, %v1349
      %v1363 = vadd.f32 %v1224, %v1352
      %v1364 = vadd.f32 %v1225, %v1355
      %v1365 = vld [vmem:[#allocation2 + $0x10] sm:$0xff]
      %v1366 = vld [vmem:[#allocation2 + $0x18] sm:$0xff]
      %v1367 = vld [vmem:[#allocation2 + $0x20] sm:$0xff]
      %v1368 = vld [vmem:[#allocation2 + $0x28] sm:$0xff]
      %v1369 = vld [vmem:[#allocation2 + $0x30] sm:$0xff]
      %v1370 = vld [vmem:[#allocation2 + $0x38] sm:$0xff]
      %v1371 = vld [vmem:[#allocation2 + $0x40] sm:$0xff]
      %v1372 = vld [vmem:[#allocation2 + $0x48] sm:$0xff]
      %s1373 = scalar_lea.vmem %s7, 384
      %v1374 = vld [vmem:[%s1373] sm:$0xff]
      %v1375 = vld [vmem:[%s1373 + $0x8] sm:$0xff]
      %v1376 = vld [vmem:[%s1373 + $0x10] sm:$0xff]
      %v1377 = vld [vmem:[%s1373 + $0x18] sm:$0xff]
      %v1378 = vld [vmem:[%s1373 + $0x20] sm:$0xff]
      %v1379 = vld [vmem:[%s1373 + $0x28] sm:$0xff]
      %v1380 = vld [vmem:[%s1373 + $0x30] sm:$0xff]
      %v1381 = vld [vmem:[%s1373 + $0x38] sm:$0xff]
      %1383 = vset.pattern.permute.xlu0 0
      %1384 = vperm.xlu0 %1383, %v1374
      %v1385 = vpop.permute.xlu0 %1384
      %1388 = vset.pattern.permute.xlu0 0
      %1389 = vperm.xlu0 %1388, %v1375
      %v1390 = vpop.permute.xlu0 %1389
      %1393 = vset.pattern.permute.xlu0 0
      %1394 = vperm.xlu0 %1393, %v1376
      %v1395 = vpop.permute.xlu0 %1394
      %1398 = vset.pattern.permute.xlu0 0
      %1399 = vperm.xlu0 %1398, %v1377
      %v1400 = vpop.permute.xlu0 %1399
      %1403 = vset.pattern.permute.xlu0 0
      %1404 = vperm.xlu0 %1403, %v1378
      %v1405 = vpop.permute.xlu0 %1404
      %1408 = vset.pattern.permute.xlu0 0
      %1409 = vperm.xlu0 %1408, %v1379
      %v1410 = vpop.permute.xlu0 %1409
      %1413 = vset.pattern.permute.xlu0 0
      %1414 = vperm.xlu0 %1413, %v1380
      %v1415 = vpop.permute.xlu0 %1414
      %1418 = vset.pattern.permute.xlu0 0
      %1419 = vperm.xlu0 %1418, %v1381
      %v1420 = vpop.permute.xlu0 %1419
      %v1422 = vmul.f32 %v1365, %v1385
      %v1423 = vmul.f32 %v1366, %v1390
      %v1424 = vmul.f32 %v1367, %v1395
      %v1425 = vmul.f32 %v1368, %v1400
      %v1426 = vmul.f32 %v1369, %v1405
      %v1427 = vmul.f32 %v1370, %v1410
      %v1428 = vmul.f32 %v1371, %v1415
      %v1429 = vmul.f32 %v1372, %v1420
      %v1430 = vld [vmem:[%s4 + $0x30] sm:$0xff]
      %v1432 = vsel %vm425, %v1422, 0
      %v1435 = vsel %vm425, %v1423, 0
      %v1438 = vsel %vm425, %v1424, 0
      %v1441 = vsel %vm425, %v1425, 0
      %v1444 = vsel %vm425, %v1426, 0
      %v1447 = vsel %vm425, %v1427, 0
      %v1450 = vsel %vm425, %v1428, 0
      %v1453 = vsel %vm425, %v1429, 0
      %1455 = vmatpush.msra.mxu0 0.0
      %1456 = vmatpush.msra.mxu0 0.0
      %1457 = vmatpush.msra.mxu0 0.0
      %1458 = vmatpush.msra.mxu0 0.0
      %1459 = vmatpush.msra.mxu0 0.0
      %1460 = vmatpush.msra.mxu0 0.0
      %1461 = vmatpush.msra.mxu0 0.0
      %1462 = vmatpush.msra.mxu0 0.0
      %1463 = vmatpush.msra.mxu0 0.0
      %1464 = vmatpush.msra.mxu0 0.0
      %1465 = vmatpush.msra.mxu0 0.0
      %1466 = vmatpush.msra.mxu0 0.0
      %1467 = vmatpush.msra.mxu0 0.0
      %1468 = vmatpush.msra.mxu0 0.0
      %1469 = vmatpush.msra.mxu0 0.0
      %1470 = vmatpush.msra.mxu0 %v1430
      %1471 = vmatmul.f32.gmra.mxu0 %v1432
      %v1472 = vpop.f32.mrf.mxu0
      %v1473 = vadd.f32 0.0, %v1472
      %1474 = vmatmul.f32.gmra.mxu0 %v1435
      %v1475 = vpop.f32.mrf.mxu0
      %v1476 = vadd.f32 0.0, %v1475
      %1477 = vmatmul.f32.gmra.mxu0 %v1438
      %v1478 = vpop.f32.mrf.mxu0
      %v1479 = vadd.f32 0.0, %v1478
      %1480 = vmatmul.f32.gmra.mxu0 %v1441
      %v1481 = vpop.f32.mrf.mxu0
      %v1482 = vadd.f32 0.0, %v1481
      %1483 = vmatmul.f32.gmra.mxu0 %v1444
      %v1484 = vpop.f32.mrf.mxu0
      %v1485 = vadd.f32 0.0, %v1484
      %1486 = vmatmul.f32.gmra.mxu0 %v1447
      %v1487 = vpop.f32.mrf.mxu0
      %v1488 = vadd.f32 0.0, %v1487
      %1489 = vmatmul.f32.gmra.mxu0 %v1450
      %v1490 = vpop.f32.mrf.mxu0
      %v1491 = vadd.f32 0.0, %v1490
      %1492 = vmatmul.f32.gmra.mxu0 %v1453
      %v1493 = vpop.f32.mrf.mxu0
      %v1494 = vadd.f32 0.0, %v1493
      %1495 = vdwg.mxu0
      %v1496 = vadd.f32 %v1357, %v1473
      %v1497 = vadd.f32 %v1358, %v1476
      %v1498 = vadd.f32 %v1359, %v1479
      %v1499 = vadd.f32 %v1360, %v1482
      %v1500 = vadd.f32 %v1361, %v1485
      %v1501 = vadd.f32 %v1362, %v1488
      %v1502 = vadd.f32 %v1363, %v1491
      %v1503 = vadd.f32 %v1364, %v1494
      %v1504 = vld [vmem:[#allocation2 + $0x11] sm:$0xff]
      %v1505 = vld [vmem:[#allocation2 + $0x19] sm:$0xff]
      %v1506 = vld [vmem:[#allocation2 + $0x21] sm:$0xff]
      %v1507 = vld [vmem:[#allocation2 + $0x29] sm:$0xff]
      %v1508 = vld [vmem:[#allocation2 + $0x31] sm:$0xff]
      %v1509 = vld [vmem:[#allocation2 + $0x39] sm:$0xff]
      %v1510 = vld [vmem:[#allocation2 + $0x41] sm:$0xff]
      %v1511 = vld [vmem:[#allocation2 + $0x49] sm:$0xff]
      %s1512 = scalar_lea.vmem %s7, 448
      %v1513 = vld [vmem:[%s1512] sm:$0xff]
      %v1514 = vld [vmem:[%s1512 + $0x8] sm:$0xff]
      %v1515 = vld [vmem:[%s1512 + $0x10] sm:$0xff]
      %v1516 = vld [vmem:[%s1512 + $0x18] sm:$0xff]
      %v1517 = vld [vmem:[%s1512 + $0x20] sm:$0xff]
      %v1518 = vld [vmem:[%s1512 + $0x28] sm:$0xff]
      %v1519 = vld [vmem:[%s1512 + $0x30] sm:$0xff]
      %v1520 = vld [vmem:[%s1512 + $0x38] sm:$0xff]
      %1522 = vset.pattern.permute.xlu0 0
      %1523 = vperm.xlu0 %1522, %v1513
      %v1524 = vpop.permute.xlu0 %1523
      %1527 = vset.pattern.permute.xlu0 0
      %1528 = vperm.xlu0 %1527, %v1514
      %v1529 = vpop.permute.xlu0 %1528
      %1532 = vset.pattern.permute.xlu0 0
      %1533 = vperm.xlu0 %1532, %v1515
      %v1534 = vpop.permute.xlu0 %1533
      %1537 = vset.pattern.permute.xlu0 0
      %1538 = vperm.xlu0 %1537, %v1516
      %v1539 = vpop.permute.xlu0 %1538
      %1542 = vset.pattern.permute.xlu0 0
      %1543 = vperm.xlu0 %1542, %v1517
      %v1544 = vpop.permute.xlu0 %1543
      %1547 = vset.pattern.permute.xlu0 0
      %1548 = vperm.xlu0 %1547, %v1518
      %v1549 = vpop.permute.xlu0 %1548
      %1552 = vset.pattern.permute.xlu0 0
      %1553 = vperm.xlu0 %1552, %v1519
      %v1554 = vpop.permute.xlu0 %1553
      %1557 = vset.pattern.permute.xlu0 0
      %1558 = vperm.xlu0 %1557, %v1520
      %v1559 = vpop.permute.xlu0 %1558
      %v1561 = vmul.f32 %v1504, %v1524
      %v1562 = vmul.f32 %v1505, %v1529
      %v1563 = vmul.f32 %v1506, %v1534
      %v1564 = vmul.f32 %v1507, %v1539
      %v1565 = vmul.f32 %v1508, %v1544
      %v1566 = vmul.f32 %v1509, %v1549
      %v1567 = vmul.f32 %v1510, %v1554
      %v1568 = vmul.f32 %v1511, %v1559
      %v1569 = vld [vmem:[%s4 + $0x38] sm:$0xff]
      %v1571 = vsel %vm425, %v1561, 0
      %v1574 = vsel %vm425, %v1562, 0
      %v1577 = vsel %vm425, %v1563, 0
      %v1580 = vsel %vm425, %v1564, 0
      %v1583 = vsel %vm425, %v1565, 0
      %v1586 = vsel %vm425, %v1566, 0
      %v1589 = vsel %vm425, %v1567, 0
      %v1592 = vsel %vm425, %v1568, 0
      %1594 = vmatpush.msra.mxu0 0.0
      %1595 = vmatpush.msra.mxu0 0.0
      %1596 = vmatpush.msra.mxu0 0.0
      %1597 = vmatpush.msra.mxu0 0.0
      %1598 = vmatpush.msra.mxu0 0.0
      %1599 = vmatpush.msra.mxu0 0.0
      %1600 = vmatpush.msra.mxu0 0.0
      %1601 = vmatpush.msra.mxu0 0.0
      %1602 = vmatpush.msra.mxu0 0.0
      %1603 = vmatpush.msra.mxu0 0.0
      %1604 = vmatpush.msra.mxu0 0.0
      %1605 = vmatpush.msra.mxu0 0.0
      %1606 = vmatpush.msra.mxu0 0.0
      %1607 = vmatpush.msra.mxu0 0.0
      %1608 = vmatpush.msra.mxu0 0.0
      %1609 = vmatpush.msra.mxu0 %v1569
      %1610 = vmatmul.f32.gmra.mxu0 %v1571
      %v1611 = vpop.f32.mrf.mxu0
      %v1612 = vadd.f32 0.0, %v1611
      %1613 = vmatmul.f32.gmra.mxu0 %v1574
      %v1614 = vpop.f32.mrf.mxu0
      %v1615 = vadd.f32 0.0, %v1614
      %1616 = vmatmul.f32.gmra.mxu0 %v1577
      %v1617 = vpop.f32.mrf.mxu0
      %v1618 = vadd.f32 0.0, %v1617
      %1619 = vmatmul.f32.gmra.mxu0 %v1580
      %v1620 = vpop.f32.mrf.mxu0
      %v1621 = vadd.f32 0.0, %v1620
      %1622 = vmatmul.f32.gmra.mxu0 %v1583
      %v1623 = vpop.f32.mrf.mxu0
      %v1624 = vadd.f32 0.0, %v1623
      %1625 = vmatmul.f32.gmra.mxu0 %v1586
      %v1626 = vpop.f32.mrf.mxu0
      %v1627 = vadd.f32 0.0, %v1626
      %1628 = vmatmul.f32.gmra.mxu0 %v1589
      %v1629 = vpop.f32.mrf.mxu0
      %v1630 = vadd.f32 0.0, %v1629
      %1631 = vmatmul.f32.gmra.mxu0 %v1592
      %v1632 = vpop.f32.mrf.mxu0
      %v1633 = vadd.f32 0.0, %v1632
      %1634 = vdwg.mxu0
      %v1635 = vadd.f32 %v1496, %v1612
      %v1636 = vadd.f32 %v1497, %v1615
      %v1637 = vadd.f32 %v1498, %v1618
      %v1638 = vadd.f32 %v1499, %v1621
      %v1639 = vadd.f32 %v1500, %v1624
      %v1640 = vadd.f32 %v1501, %v1627
      %v1641 = vadd.f32 %v1502, %v1630
      %v1642 = vadd.f32 %v1503, %v1633
      %v1643 = vld [vmem:[#allocation2 + $0x12] sm:$0xff]
      %v1644 = vld [vmem:[#allocation2 + $0x1a] sm:$0xff]
      %v1645 = vld [vmem:[#allocation2 + $0x22] sm:$0xff]
      %v1646 = vld [vmem:[#allocation2 + $0x2a] sm:$0xff]
      %v1647 = vld [vmem:[#allocation2 + $0x32] sm:$0xff]
      %v1648 = vld [vmem:[#allocation2 + $0x3a] sm:$0xff]
      %v1649 = vld [vmem:[#allocation2 + $0x42] sm:$0xff]
      %v1650 = vld [vmem:[#allocation2 + $0x4a] sm:$0xff]
      %s1651 = scalar_lea.vmem %s7, 512
      %v1652 = vld [vmem:[%s1651] sm:$0xff]
      %v1653 = vld [vmem:[%s1651 + $0x8] sm:$0xff]
      %v1654 = vld [vmem:[%s1651 + $0x10] sm:$0xff]
      %v1655 = vld [vmem:[%s1651 + $0x18] sm:$0xff]
      %v1656 = vld [vmem:[%s1651 + $0x20] sm:$0xff]
      %v1657 = vld [vmem:[%s1651 + $0x28] sm:$0xff]
      %v1658 = vld [vmem:[%s1651 + $0x30] sm:$0xff]
      %v1659 = vld [vmem:[%s1651 + $0x38] sm:$0xff]
      %1661 = vset.pattern.permute.xlu0 0
      %1662 = vperm.xlu0 %1661, %v1652
      %v1663 = vpop.permute.xlu0 %1662
      %1666 = vset.pattern.permute.xlu0 0
      %1667 = vperm.xlu0 %1666, %v1653
      %v1668 = vpop.permute.xlu0 %1667
      %1671 = vset.pattern.permute.xlu0 0
      %1672 = vperm.xlu0 %1671, %v1654
      %v1673 = vpop.permute.xlu0 %1672
      %1676 = vset.pattern.permute.xlu0 0
      %1677 = vperm.xlu0 %1676, %v1655
      %v1678 = vpop.permute.xlu0 %1677
      %1681 = vset.pattern.permute.xlu0 0
      %1682 = vperm.xlu0 %1681, %v1656
      %v1683 = vpop.permute.xlu0 %1682
      %1686 = vset.pattern.permute.xlu0 0
      %1687 = vperm.xlu0 %1686, %v1657
      %v1688 = vpop.permute.xlu0 %1687
      %1691 = vset.pattern.permute.xlu0 0
      %1692 = vperm.xlu0 %1691, %v1658
      %v1693 = vpop.permute.xlu0 %1692
      %1696 = vset.pattern.permute.xlu0 0
      %1697 = vperm.xlu0 %1696, %v1659
      %v1698 = vpop.permute.xlu0 %1697
      %v1700 = vmul.f32 %v1643, %v1663
      %v1701 = vmul.f32 %v1644, %v1668
      %v1702 = vmul.f32 %v1645, %v1673
      %v1703 = vmul.f32 %v1646, %v1678
      %v1704 = vmul.f32 %v1647, %v1683
      %v1705 = vmul.f32 %v1648, %v1688
      %v1706 = vmul.f32 %v1649, %v1693
      %v1707 = vmul.f32 %v1650, %v1698
      %v1708 = vld [vmem:[%s4 + $0x40] sm:$0xff]
      %v1710 = vsel %vm425, %v1700, 0
      %v1713 = vsel %vm425, %v1701, 0
      %v1716 = vsel %vm425, %v1702, 0
      %v1719 = vsel %vm425, %v1703, 0
      %v1722 = vsel %vm425, %v1704, 0
      %v1725 = vsel %vm425, %v1705, 0
      %v1728 = vsel %vm425, %v1706, 0
      %v1731 = vsel %vm425, %v1707, 0
      %1733 = vmatpush.msra.mxu0 0.0
      %1734 = vmatpush.msra.mxu0 0.0
      %1735 = vmatpush.msra.mxu0 0.0
      %1736 = vmatpush.msra.mxu0 0.0
      %1737 = vmatpush.msra.mxu0 0.0
      %1738 = vmatpush.msra.mxu0 0.0
      %1739 = vmatpush.msra.mxu0 0.0
      %1740 = vmatpush.msra.mxu0 0.0
      %1741 = vmatpush.msra.mxu0 0.0
      %1742 = vmatpush.msra.mxu0 0.0
      %1743 = vmatpush.msra.mxu0 0.0
      %1744 = vmatpush.msra.mxu0 0.0
      %1745 = vmatpush.msra.mxu0 0.0
      %1746 = vmatpush.msra.mxu0 0.0
      %1747 = vmatpush.msra.mxu0 0.0
      %1748 = vmatpush.msra.mxu0 %v1708
      %1749 = vmatmul.f32.gmra.mxu0 %v1710
      %v1750 = vpop.f32.mrf.mxu0
      %v1751 = vadd.f32 0.0, %v1750
      %1752 = vmatmul.f32.gmra.mxu0 %v1713
      %v1753 = vpop.f32.mrf.mxu0
      %v1754 = vadd.f32 0.0, %v1753
      %1755 = vmatmul.f32.gmra.mxu0 %v1716
      %v1756 = vpop.f32.mrf.mxu0
      %v1757 = vadd.f32 0.0, %v1756
      %1758 = vmatmul.f32.gmra.mxu0 %v1719
      %v1759 = vpop.f32.mrf.mxu0
      %v1760 = vadd.f32 0.0, %v1759
      %1761 = vmatmul.f32.gmra.mxu0 %v1722
      %v1762 = vpop.f32.mrf.mxu0
      %v1763 = vadd.f32 0.0, %v1762
      %1764 = vmatmul.f32.gmra.mxu0 %v1725
      %v1765 = vpop.f32.mrf.mxu0
      %v1766 = vadd.f32 0.0, %v1765
      %1767 = vmatmul.f32.gmra.mxu0 %v1728
      %v1768 = vpop.f32.mrf.mxu0
      %v1769 = vadd.f32 0.0, %v1768
      %1770 = vmatmul.f32.gmra.mxu0 %v1731
      %v1771 = vpop.f32.mrf.mxu0
      %v1772 = vadd.f32 0.0, %v1771
      %1773 = vdwg.mxu0
      %v1774 = vadd.f32 %v1635, %v1751
      %v1775 = vadd.f32 %v1636, %v1754
      %v1776 = vadd.f32 %v1637, %v1757
      %v1777 = vadd.f32 %v1638, %v1760
      %v1778 = vadd.f32 %v1639, %v1763
      %v1779 = vadd.f32 %v1640, %v1766
      %v1780 = vadd.f32 %v1641, %v1769
      %v1781 = vadd.f32 %v1642, %v1772
      %1782 = vst.msk [vmem:[%s325] sm:$0xff] %vm425, %v1774
      %1783 = vst.msk [vmem:[%s325 + $0x8] sm:$0xff] %vm425, %v1775
      %1784 = vst.msk [vmem:[%s325 + $0x10] sm:$0xff] %vm425, %v1776
      %1785 = vst.msk [vmem:[%s325 + $0x18] sm:$0xff] %vm425, %v1777
      %1786 = vst.msk [vmem:[%s325 + $0x20] sm:$0xff] %vm425, %v1778
      %1787 = vst.msk [vmem:[%s325 + $0x28] sm:$0xff] %vm425, %v1779
      %1788 = vst.msk [vmem:[%s325 + $0x30] sm:$0xff] %vm425, %v1780
      %1789 = vst.msk [vmem:[%s325 + $0x38] sm:$0xff] %vm425, %v1781
      %p1790 = scmp.lt.s32.totalorder %s19, 1
      %s1791 = scalar_select %p1790, %s19, 1
      %s1792 = smul.addr %s1791, 8
      %s1793 = smul.addr %s1792, 8
      %s1794 = scalar_lea.vmem %s8, %s1793
      // Predicated region
      $region53: #{tpu_custom_call.1} parent=51 // pred_check
        %p1795 = pneg %p215
      $region54: #{tpu_custom_call.1} parent=51 // pred_check_branch
        %1797 = sbr.rel (%p1795) target = $region56
      $region55: #{tpu_custom_call.1} parent=51 // pred_region
        _
      $region56: #{tpu_custom_call.1} parent=51 // pred_fallthru
        _
    $region52: #{tpu_custom_call.1} parent=5 // pred_fallthru
      _
    %p1798 = scmp.le.s32.totalorder 2, %s14
    // Predicated region
    $region57: #{tpu_custom_call.1} parent=5 // pred_check
      %p1799 = pneg %p1798
    $region58: #{tpu_custom_call.1} parent=5 // pred_check_branch
      %1801 = sbr.rel (%p1799) target = $region60
    $region59: #{tpu_custom_call.1} parent=5 // pred_region
      %s1802 = ssub.s32 %s14, 2
      // Predicated region
      $region61: #{tpu_custom_call.1} parent=59 // pred_check
        %p1803 = pneg %p221
      $region62: #{tpu_custom_call.1} parent=59 // pred_check_branch
        %1805 = sbr.rel (%p1803) target = $region64
      $region63: #{tpu_custom_call.1} parent=59 // pred_region
        %p1806 = scmp.lt.s32.totalorder %s20, 1
        %s1807 = scalar_select %p1806, %s20, 1
        %s1808 = smul.addr %s1807, 8
        %s1809 = smul.addr %s1808, 8
        %s1810 = scalar_lea.vmem %s8, %s1809
      $region64: #{tpu_custom_call.1} parent=59 // pred_fallthru
        _
    $region60: #{tpu_custom_call.1} parent=5 // pred_fallthru
      _
  $region6: #{tpu_custom_call.1} parent=0 // loop_footer
    %s18 = sadd.s32 1, %s14
  $region7: #{tpu_custom_call.1} parent=0 // loop_footer_branch
    %13 = sbr.rel target = $region3
  $region8: #{tpu_custom_call.1} parent=0 // loop_exit
    _

</llo_original>
